<compile_context>
chip_gen: v7x
topology: tpu7x:2x2x1
jax: 0.10.0
libtpu: 0.0.40
codegen_flags: <defaults>
</compile_context>

<pallas_src>
import numpy as np
import jax
import jax.numpy as jnp
from jax.experimental import pallas as pl
from jax.experimental.pallas import tpu as pltpu

# ---- hyperparameters (match ActorModel defaults, small synthetic sizes) ----
ACTION_SIZE = 2
BELIEF_SIZE = 24
STATE_SIZE = 8
HIDDEN_SIZE = 32
BATCH = 256

MEAN_SCALE = 5.0
INV_MEAN_SCALE = 1.0 / MEAN_SCALE
MIN_STD = 1e-4
INIT_STD = 5.0
THROTTLE_BASE = 0.3
RAW_INIT_STD = float(np.log(np.exp(INIT_STD) - 1.0))

MAX_BLOCK_M = 1024          # rows per grid step when the batch is large

# ---- packed parameter slab layout (lane-dense, f32) ----
FC1_IN = BELIEF_SIZE + STATE_SIZE          # 32 (belief || state)
IN_LANES = FC1_IN + ACTION_SIZE            # 34 (belief || state || eps)
ROW_W1 = 0                                 # (FC1_IN, H)
ROW_W2 = ROW_W1 + FC1_IN                   # (H, H)
ROW_W3 = ROW_W2 + HIDDEN_SIZE
ROW_W4 = ROW_W3 + HIDDEN_SIZE
ROW_W5 = ROW_W4 + HIDDEN_SIZE              # (H, 2*A), mean cols pre-scaled by 1/mean_scale
ROW_B1 = ROW_W5 + HIDDEN_SIZE              # b1..b4: one row each
ROW_B5 = ROW_B1 + 4                        # b5 (mean half /mean_scale, std half +raw_init_std)
ROW_SCALE = ROW_B5 + 1                     # [1.0, 0.2]
ROW_LOC = ROW_SCALE + 1                    # [0.0, throttle_base]
SLAB_ROWS = ((ROW_LOC + 1 + 7) // 8) * 8   # 168 (multiple of 8 sublanes)
SLAB_LANES = 128


def _elu(x):
    # F.elu (alpha=1); exp(x)-1 instead of expm1 for a guaranteed Mosaic lowering.
    return jnp.where(x > 0.0, x, jnp.exp(jnp.minimum(x, 0.0)) - 1.0)


def _softplus(x):
    # F.softplus with beta=1, threshold=20.
    return jnp.where(x > 20.0, x, jnp.log(1.0 + jnp.exp(jnp.minimum(x, 20.0))))


def actor_kernel(x_ref, w_ref, act_ref):
    """x_ref: (tm, 34) = belief||state||eps, w_ref: (168,128) packed params."""
    x = x_ref[:, 0:FC1_IN]                                 # (tm, 32)
    eps = x_ref[:, FC1_IN:FC1_IN + ACTION_SIZE]            # (tm, 2)

    # fc1 + elu
    h = _elu(
        jnp.dot(x, w_ref[ROW_W1:ROW_W1 + FC1_IN, 0:HIDDEN_SIZE],
                preferred_element_type=jnp.float32)
        + w_ref[ROW_B1:ROW_B1 + 1, 0:HIDDEN_SIZE]
    )
    # fc2..fc4 + elu (static unroll)
    for layer in range(3):
        wrow = ROW_W2 + layer * HIDDEN_SIZE
        brow = ROW_B1 + 1 + layer
        h = _elu(
            jnp.dot(h, w_ref[wrow:wrow + HIDDEN_SIZE, 0:HIDDEN_SIZE],
                    preferred_element_type=jnp.float32)
            + w_ref[brow:brow + 1, 0:HIDDEN_SIZE]
        )

    # fc5 fused (mean | std halves); 1/mean_scale and raw_init_std already folded in.
    out5 = (
        jnp.dot(h, w_ref[ROW_W5:ROW_W5 + HIDDEN_SIZE, 0:2 * ACTION_SIZE],
                preferred_element_type=jnp.float32)
        + w_ref[ROW_B5:ROW_B5 + 1, 0:2 * ACTION_SIZE]
    )                                                      # (tm, 4)
    mean = MEAN_SCALE * jnp.tanh(out5[:, 0:ACTION_SIZE])
    std = _softplus(out5[:, ACTION_SIZE:2 * ACTION_SIZE]) + MIN_STD

    # rsample + Affine(0,2)->Sigmoid->Affine(-1,2)  ==  tanh
    y = jnp.tanh(mean + std * eps)                         # (tm, 2)

    # final per-lane affine: scale=[1, 0.2], loc=[0, throttle_base] (from the slab)
    act_ref[...] = (y * w_ref[ROW_SCALE:ROW_SCALE + 1, 0:ACTION_SIZE]
                    + w_ref[ROW_LOC:ROW_LOC + 1, 0:ACTION_SIZE])


def init_params(key):
    """PyTorch-Linear-style init (uniform +/- 1/sqrt(fan_in)); returns raw params
    (for the reference) plus the packed lane-dense slab used by the kernel."""
    def linear(key, fan_in, fan_out):
        kw, kb = jax.random.split(key)
        bound = 1.0 / np.sqrt(fan_in)
        w = jax.random.uniform(kw, (fan_in, fan_out), jnp.float32, -bound, bound)
        b = jax.random.uniform(kb, (fan_out,), jnp.float32, -bound, bound)
        return w, b

    keys = jax.random.split(key, 5)
    w1, b1 = linear(keys[0], FC1_IN, HIDDEN_SIZE)
    w2, b2 = linear(keys[1], HIDDEN_SIZE, HIDDEN_SIZE)
    w3, b3 = linear(keys[2], HIDDEN_SIZE, HIDDEN_SIZE)
    w4, b4 = linear(keys[3], HIDDEN_SIZE, HIDDEN_SIZE)
    w5, b5 = linear(keys[4], HIDDEN_SIZE, 2 * ACTION_SIZE)

    slab = np.zeros((SLAB_ROWS, SLAB_LANES), np.float32)
    slab[ROW_W1:ROW_W1 + FC1_IN, :HIDDEN_SIZE] = np.asarray(w1)
    slab[ROW_W2:ROW_W2 + HIDDEN_SIZE, :HIDDEN_SIZE] = np.asarray(w2)
    slab[ROW_W3:ROW_W3 + HIDDEN_SIZE, :HIDDEN_SIZE] = np.asarray(w3)
    slab[ROW_W4:ROW_W4 + HIDDEN_SIZE, :HIDDEN_SIZE] = np.asarray(w4)

    w5_f = np.asarray(w5).copy()
    w5_f[:, :ACTION_SIZE] *= INV_MEAN_SCALE                # fold 1/mean_scale (one-time)
    b5_f = np.asarray(b5).copy()
    b5_f[:ACTION_SIZE] *= INV_MEAN_SCALE
    b5_f[ACTION_SIZE:] += RAW_INIT_STD                     # fold raw_init_std (one-time)
    slab[ROW_W5:ROW_W5 + HIDDEN_SIZE, :2 * ACTION_SIZE] = w5_f

    slab[ROW_B1 + 0, :HIDDEN_SIZE] = np.asarray(b1)
    slab[ROW_B1 + 1, :HIDDEN_SIZE] = np.asarray(b2)
    slab[ROW_B1 + 2, :HIDDEN_SIZE] = np.asarray(b3)
    slab[ROW_B1 + 3, :HIDDEN_SIZE] = np.asarray(b4)
    slab[ROW_B5, :2 * ACTION_SIZE] = b5_f
    slab[ROW_SCALE, :ACTION_SIZE] = np.array([1.0, 0.2], np.float32)
    slab[ROW_LOC, :ACTION_SIZE] = np.array([0.0, THROTTLE_BASE], np.float32)

    return dict(slab=jnp.asarray(slab),
                w1=w1, b1=b1, w2=w2, b2=b2, w3=w3, b3=b3, w4=w4, b4=b4,
                w5=w5, b5=b5)


def actor_forward(belief, state, eps, params):
    # Coalesce the three per-row inputs into one lane-contiguous (M, 34) array.
    x_in = jnp.concatenate(
        [belief.astype(jnp.float32), state.astype(jnp.float32),
         eps.astype(jnp.float32)], axis=-1)
    M = x_in.shape[0]

    # Single grid step for small batches (single-TC chips pay pure overhead per
    # extra step); tile at MAX_BLOCK_M rows only when the batch is large.
    if M <= MAX_BLOCK_M or M % MAX_BLOCK_M != 0:
        tm = M
    else:
        tm = MAX_BLOCK_M
    grid = (M // tm,)

    action = pl.pallas_call(
        actor_kernel,
        out_shape=jax.ShapeDtypeStruct((M, ACTION_SIZE), jnp.float32),
        grid=grid,
        in_specs=[
            pl.BlockSpec((tm, IN_LANES), lambda i: (i, 0)),          # rows
            pl.BlockSpec((SLAB_ROWS, SLAB_LANES), lambda i: (0, 0)),  # packed params
        ],
        out_specs=pl.BlockSpec((tm, ACTION_SIZE), lambda i: (i, 0)),
        compiler_params=pltpu.CompilerParams(
            dimension_semantics=("parallel",)),
    )(x_in, params['slab'])

    # fix_speed=False, with_logprob=False  ->  (action, None)
    return action, None


def actor_forward_ref(belief, state, eps, p):
    """Pure-JAX reference mirroring the PyTorch forward exactly (unfolded params)."""
    hp = jax.lax.Precision.HIGHEST
    x = jnp.concatenate([belief, state], axis=-1).astype(jnp.float32)
    h = jax.nn.elu(jnp.dot(x, p['w1'], precision=hp) + p['b1'])
    h = jax.nn.elu(jnp.dot(h, p['w2'], precision=hp) + p['b2'])
    h = jax.nn.elu(jnp.dot(h, p['w3'], precision=hp) + p['b3'])
    h = jax.nn.elu(jnp.dot(h, p['w4'], precision=hp) + p['b4'])
    out5 = jnp.dot(h, p['w5'], precision=hp) + p['b5']
    mean, std_pre = out5[:, :ACTION_SIZE], out5[:, ACTION_SIZE:]
    mean = MEAN_SCALE * jnp.tanh(mean / MEAN_SCALE)
    std = jax.nn.softplus(std_pre + RAW_INIT_STD) + MIN_STD
    z = mean + std * eps
    y = 2.0 * jax.nn.sigmoid(2.0 * z) - 1.0          # == tanh(z)
    loc = jnp.array([[0.0, THROTTLE_BASE]], jnp.float32)
    scale = jnp.array([[1.0, 0.2]], jnp.float32)
    return loc + scale * y


if __name__ == "__main__":
    key = jax.random.PRNGKey(0)
    k_belief, k_state, k_eps, k_params = jax.random.split(key, 4)

    belief = jax.random.normal(k_belief, (BATCH, BELIEF_SIZE), jnp.float32)
    state = jax.random.normal(k_state, (BATCH, STATE_SIZE), jnp.float32)
    eps = jax.random.normal(k_eps, (BATCH, ACTION_SIZE), jnp.float32)

    params = init_params(k_params)

    action, logp_pi = actor_forward(belief, state, eps, params)
    action = jax.block_until_ready(action)

    ref = jax.block_until_ready(actor_forward_ref(belief, state, eps, params))
    np.testing.assert_allclose(np.asarray(action), np.asarray(ref),
                               rtol=1e-4, atol=1e-4)

    assert action.shape == (BATCH, ACTION_SIZE)
    assert logp_pi is None
    print("KERNEL_OK")
</pallas_src>

<mosaic_0001>
module attributes {stable_mosaic.version = 11 : i64} {
  func.func @actor_kernel(%arg0: i32, %arg1: memref<256x34xf32, #tpu.memory_space<vmem>>, %arg2: memref<168x128xf32, #tpu.memory_space<vmem>>, %arg3: memref<256x2xf32, #tpu.memory_space<vmem>>) attributes {dimension_semantics = [#tpu.dimension_semantics<parallel>], iteration_bounds = array<i64: 1>, scalar_prefetch = 0 : i64, scratch_operands = 0 : i64, tpu.core_type = #tpu.core_type<tc>, window_params = [{transform_indices = @transform_0, window_bounds = array<i64: 256, 34>}, {pipeline_mode = #tpu.pipeline_mode<synchronous>, transform_indices = @transform_1, window_bounds = array<i64: 168, 128>}, {transform_indices = @transform_2, window_bounds = array<i64: 256, 2>}]} {
    %c0 = arith.constant 0 : index
    %c0_0 = arith.constant 0 : index
    %0 = vector.load %arg1[%c0, %c0_0] : memref<256x34xf32, #tpu.memory_space<vmem>>, vector<256x32xf32>
    %c0_1 = arith.constant 0 : index
    %c32 = arith.constant 32 : index
    %1 = vector.load %arg1[%c0_1, %c32] : memref<256x34xf32, #tpu.memory_space<vmem>>, vector<256x2xf32>
    %c0_2 = arith.constant 0 : index
    %c0_3 = arith.constant 0 : index
    %2 = vector.load %arg2[%c0_2, %c0_3] : memref<168x128xf32, #tpu.memory_space<vmem>>, vector<32x32xf32>
    %cst = arith.constant dense<0.000000e+00> : vector<256x32xf32>
    %3 = tpu.matmul %0, %2, %cst {dimension_numbers = #tpu.dot_dimension_numbers<[1], [0], [0], [1], [0, 0, 1, 1], [], []>} : vector<256x32xf32>, vector<32x32xf32>, vector<256x32xf32> -> vector<256x32xf32>
    %c160 = arith.constant 160 : index
    %c0_4 = arith.constant 0 : index
    %4 = vector.load %arg2[%c160, %c0_4] : memref<168x128xf32, #tpu.memory_space<vmem>>, vector<1x32xf32>
    %5 = vector.broadcast %4 : vector<1x32xf32> to vector<256x32xf32>
    %6 = arith.addf %3, %5 : vector<256x32xf32>
    %cst_5 = arith.constant 0.000000e+00 : f32
    %7 = vector.broadcast %cst_5 : f32 to vector<256x32xf32>
    %8 = arith.cmpf ogt, %6, %7 : vector<256x32xf32>
    %cst_6 = arith.constant 0.000000e+00 : f32
    %9 = vector.broadcast %cst_6 : f32 to vector<256x32xf32>
    %10 = arith.minimumf %6, %9 : vector<256x32xf32>
    %11 = math.exp %10 : vector<256x32xf32>
    %cst_7 = arith.constant 1.000000e+00 : f32
    %12 = vector.broadcast %cst_7 : f32 to vector<256x32xf32>
    %13 = arith.subf %11, %12 : vector<256x32xf32>
    %14 = arith.select %8, %6, %13 : vector<256x32xi1>, vector<256x32xf32>
    %c32_8 = arith.constant 32 : index
    %c0_9 = arith.constant 0 : index
    %15 = vector.load %arg2[%c32_8, %c0_9] : memref<168x128xf32, #tpu.memory_space<vmem>>, vector<32x32xf32>
    %cst_10 = arith.constant dense<0.000000e+00> : vector<256x32xf32>
    %16 = tpu.matmul %14, %15, %cst_10 {dimension_numbers = #tpu.dot_dimension_numbers<[1], [0], [0], [1], [0, 0, 1, 1], [], []>} : vector<256x32xf32>, vector<32x32xf32>, vector<256x32xf32> -> vector<256x32xf32>
    %c161 = arith.constant 161 : index
    %c0_11 = arith.constant 0 : index
    %17 = vector.load %arg2[%c161, %c0_11] : memref<168x128xf32, #tpu.memory_space<vmem>>, vector<1x32xf32>
    %18 = vector.broadcast %17 : vector<1x32xf32> to vector<256x32xf32>
    %19 = arith.addf %16, %18 : vector<256x32xf32>
    %cst_12 = arith.constant 0.000000e+00 : f32
    %20 = vector.broadcast %cst_12 : f32 to vector<256x32xf32>
    %21 = arith.cmpf ogt, %19, %20 : vector<256x32xf32>
    %cst_13 = arith.constant 0.000000e+00 : f32
    %22 = vector.broadcast %cst_13 : f32 to vector<256x32xf32>
    %23 = arith.minimumf %19, %22 : vector<256x32xf32>
    %24 = math.exp %23 : vector<256x32xf32>
    %cst_14 = arith.constant 1.000000e+00 : f32
    %25 = vector.broadcast %cst_14 : f32 to vector<256x32xf32>
    %26 = arith.subf %24, %25 : vector<256x32xf32>
    %27 = arith.select %21, %19, %26 : vector<256x32xi1>, vector<256x32xf32>
    %c64 = arith.constant 64 : index
    %c0_15 = arith.constant 0 : index
    %28 = vector.load %arg2[%c64, %c0_15] : memref<168x128xf32, #tpu.memory_space<vmem>>, vector<32x32xf32>
    %cst_16 = arith.constant dense<0.000000e+00> : vector<256x32xf32>
    %29 = tpu.matmul %27, %28, %cst_16 {dimension_numbers = #tpu.dot_dimension_numbers<[1], [0], [0], [1], [0, 0, 1, 1], [], []>} : vector<256x32xf32>, vector<32x32xf32>, vector<256x32xf32> -> vector<256x32xf32>
    %c162 = arith.constant 162 : index
    %c0_17 = arith.constant 0 : index
    %30 = vector.load %arg2[%c162, %c0_17] : memref<168x128xf32, #tpu.memory_space<vmem>>, vector<1x32xf32>
    %31 = vector.broadcast %30 : vector<1x32xf32> to vector<256x32xf32>
    %32 = arith.addf %29, %31 : vector<256x32xf32>
    %cst_18 = arith.constant 0.000000e+00 : f32
    %33 = vector.broadcast %cst_18 : f32 to vector<256x32xf32>
    %34 = arith.cmpf ogt, %32, %33 : vector<256x32xf32>
    %cst_19 = arith.constant 0.000000e+00 : f32
    %35 = vector.broadcast %cst_19 : f32 to vector<256x32xf32>
    %36 = arith.minimumf %32, %35 : vector<256x32xf32>
    %37 = math.exp %36 : vector<256x32xf32>
    %cst_20 = arith.constant 1.000000e+00 : f32
    %38 = vector.broadcast %cst_20 : f32 to vector<256x32xf32>
    %39 = arith.subf %37, %38 : vector<256x32xf32>
    %40 = arith.select %34, %32, %39 : vector<256x32xi1>, vector<256x32xf32>
    %c96 = arith.constant 96 : index
    %c0_21 = arith.constant 0 : index
    %41 = vector.load %arg2[%c96, %c0_21] : memref<168x128xf32, #tpu.memory_space<vmem>>, vector<32x32xf32>
    %cst_22 = arith.constant dense<0.000000e+00> : vector<256x32xf32>
    %42 = tpu.matmul %40, %41, %cst_22 {dimension_numbers = #tpu.dot_dimension_numbers<[1], [0], [0], [1], [0, 0, 1, 1], [], []>} : vector<256x32xf32>, vector<32x32xf32>, vector<256x32xf32> -> vector<256x32xf32>
    %c163 = arith.constant 163 : index
    %c0_23 = arith.constant 0 : index
    %43 = vector.load %arg2[%c163, %c0_23] : memref<168x128xf32, #tpu.memory_space<vmem>>, vector<1x32xf32>
    %44 = vector.broadcast %43 : vector<1x32xf32> to vector<256x32xf32>
    %45 = arith.addf %42, %44 : vector<256x32xf32>
    %cst_24 = arith.constant 0.000000e+00 : f32
    %46 = vector.broadcast %cst_24 : f32 to vector<256x32xf32>
    %47 = arith.cmpf ogt, %45, %46 : vector<256x32xf32>
    %cst_25 = arith.constant 0.000000e+00 : f32
    %48 = vector.broadcast %cst_25 : f32 to vector<256x32xf32>
    %49 = arith.minimumf %45, %48 : vector<256x32xf32>
    %50 = math.exp %49 : vector<256x32xf32>
    %cst_26 = arith.constant 1.000000e+00 : f32
    %51 = vector.broadcast %cst_26 : f32 to vector<256x32xf32>
    %52 = arith.subf %50, %51 : vector<256x32xf32>
    %53 = arith.select %47, %45, %52 : vector<256x32xi1>, vector<256x32xf32>
    %c128 = arith.constant 128 : index
    %c0_27 = arith.constant 0 : index
    %54 = vector.load %arg2[%c128, %c0_27] : memref<168x128xf32, #tpu.memory_space<vmem>>, vector<32x4xf32>
    %cst_28 = arith.constant dense<0.000000e+00> : vector<256x4xf32>
    %55 = tpu.matmul %53, %54, %cst_28 {dimension_numbers = #tpu.dot_dimension_numbers<[1], [0], [0], [1], [0, 0, 1, 1], [], []>} : vector<256x32xf32>, vector<32x4xf32>, vector<256x4xf32> -> vector<256x4xf32>
    %c164 = arith.constant 164 : index
    %c0_29 = arith.constant 0 : index
    %56 = vector.load %arg2[%c164, %c0_29] : memref<168x128xf32, #tpu.memory_space<vmem>>, vector<1x4xf32>
    %57 = vector.broadcast %56 : vector<1x4xf32> to vector<256x4xf32>
    %58 = arith.addf %55, %57 : vector<256x4xf32>
    %59 = vector.extract_strided_slice %58 {offsets = [0, 0], sizes = [256, 2], strides = [1, 1]} : vector<256x4xf32> to vector<256x2xf32>
    %60 = math.tanh %59 : vector<256x2xf32>
    %cst_30 = arith.constant 5.000000e+00 : f32
    %61 = vector.broadcast %cst_30 : f32 to vector<256x2xf32>
    %62 = arith.mulf %61, %60 : vector<256x2xf32>
    %63 = vector.extract_strided_slice %58 {offsets = [0, 2], sizes = [256, 2], strides = [1, 1]} : vector<256x4xf32> to vector<256x2xf32>
    %cst_31 = arith.constant 2.000000e+01 : f32
    %64 = vector.broadcast %cst_31 : f32 to vector<256x2xf32>
    %65 = arith.cmpf ogt, %63, %64 : vector<256x2xf32>
    %cst_32 = arith.constant 2.000000e+01 : f32
    %66 = vector.broadcast %cst_32 : f32 to vector<256x2xf32>
    %67 = arith.minimumf %63, %66 : vector<256x2xf32>
    %68 = math.exp %67 : vector<256x2xf32>
    %cst_33 = arith.constant 1.000000e+00 : f32
    %69 = vector.broadcast %cst_33 : f32 to vector<256x2xf32>
    %70 = arith.addf %69, %68 : vector<256x2xf32>
    %71 = math.log %70 : vector<256x2xf32>
    %72 = arith.select %65, %63, %71 : vector<256x2xi1>, vector<256x2xf32>
    %cst_34 = arith.constant 9.99999974E-5 : f32
    %73 = vector.broadcast %cst_34 : f32 to vector<256x2xf32>
    %74 = arith.addf %72, %73 : vector<256x2xf32>
    %75 = arith.mulf %74, %1 : vector<256x2xf32>
    %76 = arith.addf %62, %75 : vector<256x2xf32>
    %77 = math.tanh %76 : vector<256x2xf32>
    %c165 = arith.constant 165 : index
    %c0_35 = arith.constant 0 : index
    %78 = vector.load %arg2[%c165, %c0_35] : memref<168x128xf32, #tpu.memory_space<vmem>>, vector<1x2xf32>
    %79 = vector.broadcast %78 : vector<1x2xf32> to vector<256x2xf32>
    %80 = arith.mulf %77, %79 : vector<256x2xf32>
    %c166 = arith.constant 166 : index
    %c0_36 = arith.constant 0 : index
    %81 = vector.load %arg2[%c166, %c0_36] : memref<168x128xf32, #tpu.memory_space<vmem>>, vector<1x2xf32>
    %82 = vector.broadcast %81 : vector<1x2xf32> to vector<256x2xf32>
    %83 = arith.addf %80, %82 : vector<256x2xf32>
    %c0_37 = arith.constant 0 : index
    %c0_38 = arith.constant 0 : index
    %84 = vector.load %arg3[%c0_37, %c0_38] : memref<256x2xf32, #tpu.memory_space<vmem>>, vector<256x2xf32>
    tpu.vector_store %arg3[%c0_37, %c0_38], %83 {strides = array<i32>} : memref<256x2xf32, #tpu.memory_space<vmem>>, vector<256x2xf32>,
    return
  }
  func.func @transform_0(%arg0: i32) -> (i32, i32) {
    %c0_i32 = arith.constant 0 : i32
    %c0_i32_0 = arith.constant 0 : i32
    return %arg0, %c0_i32 : i32, i32
  }
  func.func @transform_1(%arg0: i32) -> (i32, i32) {
    %c0_i32 = arith.constant 0 : i32
    %c0_i32_0 = arith.constant 0 : i32
    %c0_i32_1 = arith.constant 0 : i32
    return %c0_i32, %c0_i32_0 : i32, i32
  }
  func.func @transform_2(%arg0: i32) -> (i32, i32) {
    %c0_i32 = arith.constant 0 : i32
    %c0_i32_0 = arith.constant 0 : i32
    return %arg0, %c0_i32 : i32, i32
  }
}

</mosaic_0001>

<llo_original>
// kernel: tpu_custom_call.1
$region0: #{tpu_custom_call.1}
  #allocation0 [shape = 'u32[]', space=smem, size = 0x4, offset = 0x4, fixed_abs, tag = 'smem constant byte address 0x4 - core index']
  #allocation1 [shape = 'u32[144,128]{1,0:T(1,128)}', space=vmem, size = 0x12000, scoped, tag = 'internal scratch']
  %s0 = inlined_call_operand.vmem [shape: f32[256,34], index: 0, kind: input, shape index: {}]
  %s1 = inlined_call_operand.vmem [shape: f32[168,128], index: 1, kind: input, shape index: {}]
  %s2 = inlined_call_operand.vmem [shape: f32[256,2], index: 2, kind: output, shape index: {}]
  %s3 = sld [smem:[#allocation0]]
  $region18: #{tpu_custom_call.1} parent=0
    _
  %s5 = ssub.s32 1, %s3
  %s6 = scalar_select 0, %s5, %s3
  // Predicated region
  $region2: #{tpu_custom_call.1} parent=0 // pred_check
    _
  $region3: #{tpu_custom_call.1} parent=0 // pred_check_branch
    %8 = sbr.rel (0) target = $region5
  $region4: #{tpu_custom_call.1} parent=0 // pred_region
    _
  $region5: #{tpu_custom_call.1} parent=0 // pred_fallthru
    _
  // Predicated region
  $region6: #{tpu_custom_call.1} parent=0 // pred_check
    _
  $region7: #{tpu_custom_call.1} parent=0 // pred_check_branch
    %10 = sbr.rel (0) target = $region9
  $region8: #{tpu_custom_call.1} parent=0 // pred_region
    _
  $region9: #{tpu_custom_call.1} parent=0 // pred_fallthru
    _
  %v11 = vld [vmem:[%s0] sm:$0xff]
  %v12 = vld [vmem:[%s0 + $0x8] sm:$0xff]
  %v13 = vld [vmem:[%s0 + $0x10] sm:$0xff]
  %v14 = vld [vmem:[%s0 + $0x18] sm:$0xff]
  %v15 = vld [vmem:[%s0 + $0x20] sm:$0xff]
  %v16 = vld [vmem:[%s0 + $0x28] sm:$0xff]
  %v17 = vld [vmem:[%s0 + $0x30] sm:$0xff]
  %v18 = vld [vmem:[%s0 + $0x38] sm:$0xff]
  %v19 = vld [vmem:[%s0 + $0x40] sm:$0xff]
  %v20 = vld [vmem:[%s0 + $0x48] sm:$0xff]
  %v21 = vld [vmem:[%s0 + $0x50] sm:$0xff]
  %v22 = vld [vmem:[%s0 + $0x58] sm:$0xff]
  %v23 = vld [vmem:[%s0 + $0x60] sm:$0xff]
  %v24 = vld [vmem:[%s0 + $0x68] sm:$0xff]
  %v25 = vld [vmem:[%s0 + $0x70] sm:$0xff]
  %v26 = vld [vmem:[%s0 + $0x78] sm:$0xff]
  %v27 = vld [vmem:[%s0 + $0x80] sm:$0xff]
  %v28 = vld [vmem:[%s0 + $0x88] sm:$0xff]
  %v29 = vld [vmem:[%s0 + $0x90] sm:$0xff]
  %v30 = vld [vmem:[%s0 + $0x98] sm:$0xff]
  %v31 = vld [vmem:[%s0 + $0xa0] sm:$0xff]
  %v32 = vld [vmem:[%s0 + $0xa8] sm:$0xff]
  %v33 = vld [vmem:[%s0 + $0xb0] sm:$0xff]
  %v34 = vld [vmem:[%s0 + $0xb8] sm:$0xff]
  %v35 = vld [vmem:[%s0 + $0xc0] sm:$0xff]
  %v36 = vld [vmem:[%s0 + $0xc8] sm:$0xff]
  %v37 = vld [vmem:[%s0 + $0xd0] sm:$0xff]
  %v38 = vld [vmem:[%s0 + $0xd8] sm:$0xff]
  %v39 = vld [vmem:[%s0 + $0xe0] sm:$0xff]
  %v40 = vld [vmem:[%s0 + $0xe8] sm:$0xff]
  %v41 = vld [vmem:[%s0 + $0xf0] sm:$0xff]
  %v42 = vld [vmem:[%s0 + $0xf8] sm:$0xff]
  %v43 = vld [vmem:[%s1] sm:$0xff]
  %v44 = vld [vmem:[%s1 + $0x8] sm:$0xff]
  %v45 = vld [vmem:[%s1 + $0x10] sm:$0xff]
  %v46 = vld [vmem:[%s1 + $0x18] sm:$0xff]
  %v47 = vld [vmem:[%s1 + $0xa0] sm:$0x1]
  %v48 = vlaneseq
  %v49 = vshrl.u32 %v48, 7
  %v50 = vsub.s32 0, %v49
  %v51 = vrot.slane %v47, %v50
  %vm52 = vcmask 261120
  %v54 = vsel %vm52, %v11, 0
  %v57 = vsel %vm52, %v12, 0
  %v60 = vsel %vm52, %v13, 0
  %v63 = vsel %vm52, %v14, 0
  %v66 = vsel %vm52, %v15, 0
  %v69 = vsel %vm52, %v16, 0
  %v72 = vsel %vm52, %v17, 0
  %v75 = vsel %vm52, %v18, 0
  %v78 = vsel %vm52, %v19, 0
  %v81 = vsel %vm52, %v20, 0
  %v84 = vsel %vm52, %v21, 0
  %v87 = vsel %vm52, %v22, 0
  %v90 = vsel %vm52, %v23, 0
  %v93 = vsel %vm52, %v24, 0
  %v96 = vsel %vm52, %v25, 0
  %v99 = vsel %vm52, %v26, 0
  %v102 = vsel %vm52, %v27, 0
  %v105 = vsel %vm52, %v28, 0
  %v108 = vsel %vm52, %v29, 0
  %v111 = vsel %vm52, %v30, 0
  %v114 = vsel %vm52, %v31, 0
  %v117 = vsel %vm52, %v32, 0
  %v120 = vsel %vm52, %v33, 0
  %v123 = vsel %vm52, %v34, 0
  %v126 = vsel %vm52, %v35, 0
  %v129 = vsel %vm52, %v36, 0
  %v132 = vsel %vm52, %v37, 0
  %v135 = vsel %vm52, %v38, 0
  %v138 = vsel %vm52, %v39, 0
  %v141 = vsel %vm52, %v40, 0
  %v144 = vsel %vm52, %v41, 0
  %v147 = vsel %vm52, %v42, 0
  %149 = vmatprep.subr.mxu0 0.0
  %150 = vmatpush1.msra.mxu0 %v43
  %151 = vmatprep.subr.mxu0 0.0
  %152 = vmatpush1.msra.mxu0 %v44
  %153 = vmatprep.subr.mxu0 0.0
  %154 = vmatpush1.msra.mxu0 %v45
  %155 = vmatprep.subr.mxu0 0.0
  %156 = vmatpush1.msra.mxu0 %v46
  %157 = vmatprep.subr.mxu0 0.0
  %158 = vmatpush1.msra.mxu0 0.0
  %159 = vmatprep.subr.mxu0 0.0
  %160 = vmatpush1.msra.mxu0 0.0
  %161 = vmatprep.subr.mxu0 0.0
  %162 = vmatpush1.msra.mxu0 0.0
  %163 = vmatprep.subr.mxu0 0.0
  %164 = vmatpush1.msra.mxu0 0.0
  %165 = vmatprep.subr.mxu0 0.0
  %166 = vmatpush1.msra.mxu0 0.0
  %167 = vmatprep.subr.mxu0 0.0
  %168 = vmatpush1.msra.mxu0 0.0
  %169 = vmatprep.subr.mxu0 0.0
  %170 = vmatpush1.msra.mxu0 0.0
  %171 = vmatprep.subr.mxu0 0.0
  %172 = vmatpush1.msra.mxu0 0.0
  %173 = vmatprep.subr.mxu0 0.0
  %174 = vmatpush1.msra.mxu0 0.0
  %175 = vmatprep.subr.mxu0 0.0
  %176 = vmatpush1.msra.mxu0 0.0
  %177 = vmatprep.subr.mxu0 0.0
  %178 = vmatpush1.msra.mxu0 0.0
  %179 = vmatprep.subr.mxu0 0.0
  %180 = vmatpush1.msra.mxu0 0.0
  %181 = vmatprep.subr.mxu0 0.0
  %182 = vmatpush1.msra.mxu0 0.0
  %183 = vmatprep.subr.mxu0 0.0
  %184 = vmatpush1.msra.mxu0 0.0
  %185 = vmatprep.subr.mxu0 0.0
  %186 = vmatpush1.msra.mxu0 0.0
  %187 = vmatprep.subr.mxu0 0.0
  %188 = vmatpush1.msra.mxu0 0.0
  %189 = vmatprep.subr.mxu0 0.0
  %190 = vmatpush1.msra.mxu0 0.0
  %191 = vmatprep.subr.mxu0 0.0
  %192 = vmatpush1.msra.mxu0 0.0
  %193 = vmatprep.subr.mxu0 0.0
  %194 = vmatpush1.msra.mxu0 0.0
  %195 = vmatprep.subr.mxu0 0.0
  %196 = vmatpush1.msra.mxu0 0.0
  %197 = vmatprep.subr.mxu0 0.0
  %198 = vmatpush1.msra.mxu0 0.0
  %199 = vmatprep.subr.mxu0 0.0
  %200 = vmatpush1.msra.mxu0 0.0
  %201 = vmatprep.subr.mxu0 0.0
  %202 = vmatpush1.msra.mxu0 0.0
  %203 = vmatprep.subr.mxu0 0.0
  %204 = vmatpush1.msra.mxu0 0.0
  %205 = vmatprep.subr.mxu0 0.0
  %206 = vmatpush1.msra.mxu0 0.0
  %207 = vmatprep.subr.mxu0 0.0
  %208 = vmatpush1.msra.mxu0 0.0
  %209 = vmatprep.subr.mxu0 0.0
  %210 = vmatpush1.msra.mxu0 0.0
  %211 = vmatprep.subr.mxu0 0.0
  %212 = vmatpush1.msra.mxu0 0.0
  %213 = vmatprep.mubr.f32.mxu0 0.0
  %214 = vmatmul.mubr.f32.gmra.mrb[0].mxu0 %v54
  %v215 = vpop.f32.mrb[0].mxu0
  %v216 = vadd.f32 %v51, %v215
  %v217 = vpop.f32.mrb[0].mxu0
  %218 = vmatprep.mubr.f32.mxu0 0.0
  %219 = vmatmul.mubr.f32.gmra.mrb[0].mxu0 %v57
  %v220 = vpop.f32.mrb[0].mxu0
  %v221 = vadd.f32 %v51, %v220
  %v222 = vpop.f32.mrb[0].mxu0
  %223 = vmatprep.mubr.f32.mxu0 0.0
  %224 = vmatmul.mubr.f32.gmra.mrb[0].mxu0 %v60
  %v225 = vpop.f32.mrb[0].mxu0
  %v226 = vadd.f32 %v51, %v225
  %v227 = vpop.f32.mrb[0].mxu0
  %228 = vmatprep.mubr.f32.mxu0 0.0
  %229 = vmatmul.mubr.f32.gmra.mrb[0].mxu0 %v63
  %v230 = vpop.f32.mrb[0].mxu0
  %v231 = vadd.f32 %v51, %v230
  %v232 = vpop.f32.mrb[0].mxu0
  %233 = vmatprep.mubr.f32.mxu0 0.0
  %234 = vmatmul.mubr.f32.gmra.mrb[0].mxu0 %v66
  %v235 = vpop.f32.mrb[0].mxu0
  %v236 = vadd.f32 %v51, %v235
  %v237 = vpop.f32.mrb[0].mxu0
  %238 = vmatprep.mubr.f32.mxu0 0.0
  %239 = vmatmul.mubr.f32.gmra.mrb[0].mxu0 %v69
  %v240 = vpop.f32.mrb[0].mxu0
  %v241 = vadd.f32 %v51, %v240
  %v242 = vpop.f32.mrb[0].mxu0
  %243 = vmatprep.mubr.f32.mxu0 0.0
  %244 = vmatmul.mubr.f32.gmra.mrb[0].mxu0 %v72
  %v245 = vpop.f32.mrb[0].mxu0
  %v246 = vadd.f32 %v51, %v245
  %v247 = vpop.f32.mrb[0].mxu0
  %248 = vmatprep.mubr.f32.mxu0 0.0
  %249 = vmatmul.mubr.f32.gmra.mrb[0].mxu0 %v75
  %v250 = vpop.f32.mrb[0].mxu0
  %v251 = vadd.f32 %v51, %v250
  %v252 = vpop.f32.mrb[0].mxu0
  %253 = vmatprep.mubr.f32.mxu0 0.0
  %254 = vmatmul.mubr.f32.gmra.mrb[0].mxu0 %v78
  %v255 = vpop.f32.mrb[0].mxu0
  %v256 = vadd.f32 %v51, %v255
  %v257 = vpop.f32.mrb[0].mxu0
  %258 = vmatprep.mubr.f32.mxu0 0.0
  %259 = vmatmul.mubr.f32.gmra.mrb[0].mxu0 %v81
  %v260 = vpop.f32.mrb[0].mxu0
  %v261 = vadd.f32 %v51, %v260
  %v262 = vpop.f32.mrb[0].mxu0
  %263 = vmatprep.mubr.f32.mxu0 0.0
  %264 = vmatmul.mubr.f32.gmra.mrb[0].mxu0 %v84
  %v265 = vpop.f32.mrb[0].mxu0
  %v266 = vadd.f32 %v51, %v265
  %v267 = vpop.f32.mrb[0].mxu0
  %268 = vmatprep.mubr.f32.mxu0 0.0
  %269 = vmatmul.mubr.f32.gmra.mrb[0].mxu0 %v87
  %v270 = vpop.f32.mrb[0].mxu0
  %v271 = vadd.f32 %v51, %v270
  %v272 = vpop.f32.mrb[0].mxu0
  %273 = vmatprep.mubr.f32.mxu0 0.0
  %274 = vmatmul.mubr.f32.gmra.mrb[0].mxu0 %v90
  %v275 = vpop.f32.mrb[0].mxu0
  %v276 = vadd.f32 %v51, %v275
  %v277 = vpop.f32.mrb[0].mxu0
  %278 = vmatprep.mubr.f32.mxu0 0.0
  %279 = vmatmul.mubr.f32.gmra.mrb[0].mxu0 %v93
  %v280 = vpop.f32.mrb[0].mxu0
  %v281 = vadd.f32 %v51, %v280
  %v282 = vpop.f32.mrb[0].mxu0
  %283 = vmatprep.mubr.f32.mxu0 0.0
  %284 = vmatmul.mubr.f32.gmra.mrb[0].mxu0 %v96
  %v285 = vpop.f32.mrb[0].mxu0
  %v286 = vadd.f32 %v51, %v285
  %v287 = vpop.f32.mrb[0].mxu0
  %288 = vmatprep.mubr.f32.mxu0 0.0
  %289 = vmatmul.mubr.f32.gmra.mrb[0].mxu0 %v99
  %v290 = vpop.f32.mrb[0].mxu0
  %v291 = vadd.f32 %v51, %v290
  %v292 = vpop.f32.mrb[0].mxu0
  %293 = vmatprep.mubr.f32.mxu0 0.0
  %294 = vmatmul.mubr.f32.gmra.mrb[0].mxu0 %v102
  %v295 = vpop.f32.mrb[0].mxu0
  %v296 = vadd.f32 %v51, %v295
  %v297 = vpop.f32.mrb[0].mxu0
  %298 = vmatprep.mubr.f32.mxu0 0.0
  %299 = vmatmul.mubr.f32.gmra.mrb[0].mxu0 %v105
  %v300 = vpop.f32.mrb[0].mxu0
  %v301 = vadd.f32 %v51, %v300
  %v302 = vpop.f32.mrb[0].mxu0
  %303 = vmatprep.mubr.f32.mxu0 0.0
  %304 = vmatmul.mubr.f32.gmra.mrb[0].mxu0 %v108
  %v305 = vpop.f32.mrb[0].mxu0
  %v306 = vadd.f32 %v51, %v305
  %v307 = vpop.f32.mrb[0].mxu0
  %308 = vmatprep.mubr.f32.mxu0 0.0
  %309 = vmatmul.mubr.f32.gmra.mrb[0].mxu0 %v111
  %v310 = vpop.f32.mrb[0].mxu0
  %v311 = vadd.f32 %v51, %v310
  %v312 = vpop.f32.mrb[0].mxu0
  %313 = vmatprep.mubr.f32.mxu0 0.0
  %314 = vmatmul.mubr.f32.gmra.mrb[0].mxu0 %v114
  %v315 = vpop.f32.mrb[0].mxu0
  %v316 = vadd.f32 %v51, %v315
  %v317 = vpop.f32.mrb[0].mxu0
  %318 = vmatprep.mubr.f32.mxu0 0.0
  %319 = vmatmul.mubr.f32.gmra.mrb[0].mxu0 %v117
  %v320 = vpop.f32.mrb[0].mxu0
  %v321 = vadd.f32 %v51, %v320
  %v322 = vpop.f32.mrb[0].mxu0
  %323 = vmatprep.mubr.f32.mxu0 0.0
  %324 = vmatmul.mubr.f32.gmra.mrb[0].mxu0 %v120
  %v325 = vpop.f32.mrb[0].mxu0
  %v326 = vadd.f32 %v51, %v325
  %v327 = vpop.f32.mrb[0].mxu0
  %328 = vmatprep.mubr.f32.mxu0 0.0
  %329 = vmatmul.mubr.f32.gmra.mrb[0].mxu0 %v123
  %v330 = vpop.f32.mrb[0].mxu0
  %v331 = vadd.f32 %v51, %v330
  %v332 = vpop.f32.mrb[0].mxu0
  %333 = vmatprep.mubr.f32.mxu0 0.0
  %334 = vmatmul.mubr.f32.gmra.mrb[0].mxu0 %v126
  %v335 = vpop.f32.mrb[0].mxu0
  %v336 = vadd.f32 %v51, %v335
  %v337 = vpop.f32.mrb[0].mxu0
  %338 = vmatprep.mubr.f32.mxu0 0.0
  %339 = vmatmul.mubr.f32.gmra.mrb[0].mxu0 %v129
  %v340 = vpop.f32.mrb[0].mxu0
  %v341 = vadd.f32 %v51, %v340
  %v342 = vpop.f32.mrb[0].mxu0
  %343 = vmatprep.mubr.f32.mxu0 0.0
  %344 = vmatmul.mubr.f32.gmra.mrb[0].mxu0 %v132
  %v345 = vpop.f32.mrb[0].mxu0
  %v346 = vadd.f32 %v51, %v345
  %v347 = vpop.f32.mrb[0].mxu0
  %348 = vmatprep.mubr.f32.mxu0 0.0
  %349 = vmatmul.mubr.f32.gmra.mrb[0].mxu0 %v135
  %v350 = vpop.f32.mrb[0].mxu0
  %v351 = vadd.f32 %v51, %v350
  %v352 = vpop.f32.mrb[0].mxu0
  %353 = vmatprep.mubr.f32.mxu0 0.0
  %354 = vmatmul.mubr.f32.gmra.mrb[0].mxu0 %v138
  %v355 = vpop.f32.mrb[0].mxu0
  %v356 = vadd.f32 %v51, %v355
  %v357 = vpop.f32.mrb[0].mxu0
  %358 = vmatprep.mubr.f32.mxu0 0.0
  %359 = vmatmul.mubr.f32.gmra.mrb[0].mxu0 %v141
  %v360 = vpop.f32.mrb[0].mxu0
  %v361 = vadd.f32 %v51, %v360
  %v362 = vpop.f32.mrb[0].mxu0
  %363 = vmatprep.mubr.f32.mxu0 0.0
  %364 = vmatmul.mubr.f32.gmra.mrb[0].mxu0 %v144
  %v365 = vpop.f32.mrb[0].mxu0
  %v366 = vadd.f32 %v51, %v365
  %v367 = vpop.f32.mrb[0].mxu0
  %368 = vmatprep.mubr.f32.mxu0 0.0
  %369 = vmatmul.mubr.f32.gmra.mrb[0].mxu0 %v147
  %v370 = vpop.f32.mrb[0].mxu0
  %v371 = vadd.f32 %v51, %v370
  %v372 = vpop.f32.mrb[0].mxu0
  %373 = vdwg.mxu0
  %vm374 = vcmp.gt.f32.partialorder %v216, 0.0
  %vm375 = vcmp.gt.f32.partialorder %v221, 0.0
  %vm376 = vcmp.gt.f32.partialorder %v226, 0.0
  %vm377 = vcmp.gt.f32.partialorder %v231, 0.0
  %vm378 = vcmp.gt.f32.partialorder %v236, 0.0
  %vm379 = vcmp.gt.f32.partialorder %v241, 0.0
  %vm380 = vcmp.gt.f32.partialorder %v246, 0.0
  %vm381 = vcmp.gt.f32.partialorder %v251, 0.0
  %vm382 = vcmp.gt.f32.partialorder %v256, 0.0
  %vm383 = vcmp.gt.f32.partialorder %v261, 0.0
  %vm384 = vcmp.gt.f32.partialorder %v266, 0.0
  %vm385 = vcmp.gt.f32.partialorder %v271, 0.0
  %vm386 = vcmp.gt.f32.partialorder %v276, 0.0
  %vm387 = vcmp.gt.f32.partialorder %v281, 0.0
  %vm388 = vcmp.gt.f32.partialorder %v286, 0.0
  %vm389 = vcmp.gt.f32.partialorder %v291, 0.0
  %vm390 = vcmp.gt.f32.partialorder %v296, 0.0
  %vm391 = vcmp.gt.f32.partialorder %v301, 0.0
  %vm392 = vcmp.gt.f32.partialorder %v306, 0.0
  %vm393 = vcmp.gt.f32.partialorder %v311, 0.0
  %vm394 = vcmp.gt.f32.partialorder %v316, 0.0
  %vm395 = vcmp.gt.f32.partialorder %v321, 0.0
  %vm396 = vcmp.gt.f32.partialorder %v326, 0.0
  %vm397 = vcmp.gt.f32.partialorder %v331, 0.0
  %vm398 = vcmp.gt.f32.partialorder %v336, 0.0
  %vm399 = vcmp.gt.f32.partialorder %v341, 0.0
  %vm400 = vcmp.gt.f32.partialorder %v346, 0.0
  %vm401 = vcmp.gt.f32.partialorder %v351, 0.0
  %vm402 = vcmp.gt.f32.partialorder %v356, 0.0
  %vm403 = vcmp.gt.f32.partialorder %v361, 0.0
  %vm404 = vcmp.gt.f32.partialorder %v366, 0.0
  %vm405 = vcmp.gt.f32.partialorder %v371, 0.0
  %v406 = vmin.f32 %v216, 0.0
  %v407 = vmin.f32 %v221, 0.0
  %v408 = vmin.f32 %v226, 0.0
  %v409 = vmin.f32 %v231, 0.0
  %v410 = vmin.f32 %v236, 0.0
  %v411 = vmin.f32 %v241, 0.0
  %v412 = vmin.f32 %v246, 0.0
  %v413 = vmin.f32 %v251, 0.0
  %v414 = vmin.f32 %v256, 0.0
  %v415 = vmin.f32 %v261, 0.0
  %v416 = vmin.f32 %v266, 0.0
  %v417 = vmin.f32 %v271, 0.0
  %v418 = vmin.f32 %v276, 0.0
  %v419 = vmin.f32 %v281, 0.0
  %v420 = vmin.f32 %v286, 0.0
  %v421 = vmin.f32 %v291, 0.0
  %v422 = vmin.f32 %v296, 0.0
  %v423 = vmin.f32 %v301, 0.0
  %v424 = vmin.f32 %v306, 0.0
  %v425 = vmin.f32 %v311, 0.0
  %v426 = vmin.f32 %v316, 0.0
  %v427 = vmin.f32 %v321, 0.0
  %v428 = vmin.f32 %v326, 0.0
  %v429 = vmin.f32 %v331, 0.0
  %v430 = vmin.f32 %v336, 0.0
  %v431 = vmin.f32 %v341, 0.0
  %v432 = vmin.f32 %v346, 0.0
  %v433 = vmin.f32 %v351, 0.0
  %v434 = vmin.f32 %v356, 0.0
  %v435 = vmin.f32 %v361, 0.0
  %v436 = vmin.f32 %v366, 0.0
  %v437 = vmin.f32 %v371, 0.0
  %v438 = vmul.f32 %v406, 1.442695
  %v439 = vpow.pop %v438
  %v440 = vmul.f32 %v407, 1.442695
  %v441 = vpow.pop %v440
  %v442 = vmul.f32 %v408, 1.442695
  %v443 = vpow.pop %v442
  %v444 = vmul.f32 %v409, 1.442695
  %v445 = vpow.pop %v444
  %v446 = vmul.f32 %v410, 1.442695
  %v447 = vpow.pop %v446
  %v448 = vmul.f32 %v411, 1.442695
  %v449 = vpow.pop %v448
  %v450 = vmul.f32 %v412, 1.442695
  %v451 = vpow.pop %v450
  %v452 = vmul.f32 %v413, 1.442695
  %v453 = vpow.pop %v452
  %v454 = vmul.f32 %v414, 1.442695
  %v455 = vpow.pop %v454
  %v456 = vmul.f32 %v415, 1.442695
  %v457 = vpow.pop %v456
  %v458 = vmul.f32 %v416, 1.442695
  %v459 = vpow.pop %v458
  %v460 = vmul.f32 %v417, 1.442695
  %v461 = vpow.pop %v460
  %v462 = vmul.f32 %v418, 1.442695
  %v463 = vpow.pop %v462
  %v464 = vmul.f32 %v419, 1.442695
  %v465 = vpow.pop %v464
  %v466 = vmul.f32 %v420, 1.442695
  %v467 = vpow.pop %v466
  %v468 = vmul.f32 %v421, 1.442695
  %v469 = vpow.pop %v468
  %v470 = vmul.f32 %v422, 1.442695
  %v471 = vpow.pop %v470
  %v472 = vmul.f32 %v423, 1.442695
  %v473 = vpow.pop %v472
  %v474 = vmul.f32 %v424, 1.442695
  %v475 = vpow.pop %v474
  %v476 = vmul.f32 %v425, 1.442695
  %v477 = vpow.pop %v476
  %v478 = vmul.f32 %v426, 1.442695
  %v479 = vpow.pop %v478
  %v480 = vmul.f32 %v427, 1.442695
  %v481 = vpow.pop %v480
  %v482 = vmul.f32 %v428, 1.442695
  %v483 = vpow.pop %v482
  %v484 = vmul.f32 %v429, 1.442695
  %v485 = vpow.pop %v484
  %v486 = vmul.f32 %v430, 1.442695
  %v487 = vpow.pop %v486
  %v488 = vmul.f32 %v431, 1.442695
  %v489 = vpow.pop %v488
  %v490 = vmul.f32 %v432, 1.442695
  %v491 = vpow.pop %v490
  %v492 = vmul.f32 %v433, 1.442695
  %v493 = vpow.pop %v492
  %v494 = vmul.f32 %v434, 1.442695
  %v495 = vpow.pop %v494
  %v496 = vmul.f32 %v435, 1.442695
  %v497 = vpow.pop %v496
  %v498 = vmul.f32 %v436, 1.442695
  %v499 = vpow.pop %v498
  %v500 = vmul.f32 %v437, 1.442695
  %v501 = vpow.pop %v500
  %v502 = vsub.f32 %v439, 1.0
  %v503 = vsub.f32 %v441, 1.0
  %v504 = vsub.f32 %v443, 1.0
  %v505 = vsub.f32 %v445, 1.0
  %v506 = vsub.f32 %v447, 1.0
  %v507 = vsub.f32 %v449, 1.0
  %v508 = vsub.f32 %v451, 1.0
  %v509 = vsub.f32 %v453, 1.0
  %v510 = vsub.f32 %v455, 1.0
  %v511 = vsub.f32 %v457, 1.0
  %v512 = vsub.f32 %v459, 1.0
  %v513 = vsub.f32 %v461, 1.0
  %v514 = vsub.f32 %v463, 1.0
  %v515 = vsub.f32 %v465, 1.0
  %v516 = vsub.f32 %v467, 1.0
  %v517 = vsub.f32 %v469, 1.0
  %v518 = vsub.f32 %v471, 1.0
  %v519 = vsub.f32 %v473, 1.0
  %v520 = vsub.f32 %v475, 1.0
  %v521 = vsub.f32 %v477, 1.0
  %v522 = vsub.f32 %v479, 1.0
  %v523 = vsub.f32 %v481, 1.0
  %v524 = vsub.f32 %v483, 1.0
  %v525 = vsub.f32 %v485, 1.0
  %v526 = vsub.f32 %v487, 1.0
  %v527 = vsub.f32 %v489, 1.0
  %v528 = vsub.f32 %v491, 1.0
  %v529 = vsub.f32 %v493, 1.0
  %v530 = vsub.f32 %v495, 1.0
  %v531 = vsub.f32 %v497, 1.0
  %v532 = vsub.f32 %v499, 1.0
  %v533 = vsub.f32 %v501, 1.0
  %v534 = vsel %vm374, %v216, %v502
  %v535 = vsel %vm375, %v221, %v503
  %v536 = vsel %vm376, %v226, %v504
  %v537 = vsel %vm377, %v231, %v505
  %v538 = vsel %vm378, %v236, %v506
  %v539 = vsel %vm379, %v241, %v507
  %v540 = vsel %vm380, %v246, %v508
  %v541 = vsel %vm381, %v251, %v509
  %v542 = vsel %vm382, %v256, %v510
  %v543 = vsel %vm383, %v261, %v511
  %v544 = vsel %vm384, %v266, %v512
  %v545 = vsel %vm385, %v271, %v513
  %v546 = vsel %vm386, %v276, %v514
  %v547 = vsel %vm387, %v281, %v515
  %v548 = vsel %vm388, %v286, %v516
  %v549 = vsel %vm389, %v291, %v517
  %v550 = vsel %vm390, %v296, %v518
  %v551 = vsel %vm391, %v301, %v519
  %v552 = vsel %vm392, %v306, %v520
  %v553 = vsel %vm393, %v311, %v521
  %v554 = vsel %vm394, %v316, %v522
  %v555 = vsel %vm395, %v321, %v523
  %v556 = vsel %vm396, %v326, %v524
  %v557 = vsel %vm397, %v331, %v525
  %v558 = vsel %vm398, %v336, %v526
  %v559 = vsel %vm399, %v341, %v527
  %v560 = vsel %vm400, %v346, %v528
  %v561 = vsel %vm401, %v351, %v529
  %v562 = vsel %vm402, %v356, %v530
  %v563 = vsel %vm403, %v361, %v531
  %v564 = vsel %vm404, %v366, %v532
  %v565 = vsel %vm405, %v371, %v533
  %v566 = vld [vmem:[%s1 + $0x20] sm:$0xff]
  %v567 = vld [vmem:[%s1 + $0x28] sm:$0xff]
  %v568 = vld [vmem:[%s1 + $0x30] sm:$0xff]
  %v569 = vld [vmem:[%s1 + $0x38] sm:$0xff]
  %v570 = vld [vmem:[%s1 + $0xa1] sm:$0x1]
  %v571 = vlaneseq
  %v572 = vshrl.u32 %v571, 7
  %v573 = vsub.s32 0, %v572
  %v574 = vrot.slane %v570, %v573
  %v576 = vsel %vm52, %v534, 0
  %v579 = vsel %vm52, %v535, 0
  %v582 = vsel %vm52, %v536, 0
  %v585 = vsel %vm52, %v537, 0
  %v588 = vsel %vm52, %v538, 0
  %v591 = vsel %vm52, %v539, 0
  %v594 = vsel %vm52, %v540, 0
  %v597 = vsel %vm52, %v541, 0
  %v600 = vsel %vm52, %v542, 0
  %v603 = vsel %vm52, %v543, 0
  %v606 = vsel %vm52, %v544, 0
  %v609 = vsel %vm52, %v545, 0
  %v612 = vsel %vm52, %v546, 0
  %v615 = vsel %vm52, %v547, 0
  %v618 = vsel %vm52, %v548, 0
  %v621 = vsel %vm52, %v549, 0
  %v624 = vsel %vm52, %v550, 0
  %v627 = vsel %vm52, %v551, 0
  %v630 = vsel %vm52, %v552, 0
  %v633 = vsel %vm52, %v553, 0
  %v636 = vsel %vm52, %v554, 0
  %v639 = vsel %vm52, %v555, 0
  %v642 = vsel %vm52, %v556, 0
  %v645 = vsel %vm52, %v557, 0
  %v648 = vsel %vm52, %v558, 0
  %v651 = vsel %vm52, %v559, 0
  %v654 = vsel %vm52, %v560, 0
  %v657 = vsel %vm52, %v561, 0
  %v660 = vsel %vm52, %v562, 0
  %v663 = vsel %vm52, %v563, 0
  %v666 = vsel %vm52, %v564, 0
  %v669 = vsel %vm52, %v565, 0
  %671 = vmatprep.subr.mxu0 0.0
  %672 = vmatpush1.msra.mxu0 %v566
  %673 = vmatprep.subr.mxu0 0.0
  %674 = vmatpush1.msra.mxu0 %v567
  %675 = vmatprep.subr.mxu0 0.0
  %676 = vmatpush1.msra.mxu0 %v568
  %677 = vmatprep.subr.mxu0 0.0
  %678 = vmatpush1.msra.mxu0 %v569
  %679 = vmatprep.subr.mxu0 0.0
  %680 = vmatpush1.msra.mxu0 0.0
  %681 = vmatprep.subr.mxu0 0.0
  %682 = vmatpush1.msra.mxu0 0.0
  %683 = vmatprep.subr.mxu0 0.0
  %684 = vmatpush1.msra.mxu0 0.0
  %685 = vmatprep.subr.mxu0 0.0
  %686 = vmatpush1.msra.mxu0 0.0
  %687 = vmatprep.subr.mxu0 0.0
  %688 = vmatpush1.msra.mxu0 0.0
  %689 = vmatprep.subr.mxu0 0.0
  %690 = vmatpush1.msra.mxu0 0.0
  %691 = vmatprep.subr.mxu0 0.0
  %692 = vmatpush1.msra.mxu0 0.0
  %693 = vmatprep.subr.mxu0 0.0
  %694 = vmatpush1.msra.mxu0 0.0
  %695 = vmatprep.subr.mxu0 0.0
  %696 = vmatpush1.msra.mxu0 0.0
  %697 = vmatprep.subr.mxu0 0.0
  %698 = vmatpush1.msra.mxu0 0.0
  %699 = vmatprep.subr.mxu0 0.0
  %700 = vmatpush1.msra.mxu0 0.0
  %701 = vmatprep.subr.mxu0 0.0
  %702 = vmatpush1.msra.mxu0 0.0
  %703 = vmatprep.subr.mxu0 0.0
  %704 = vmatpush1.msra.mxu0 0.0
  %705 = vmatprep.subr.mxu0 0.0
  %706 = vmatpush1.msra.mxu0 0.0
  %707 = vmatprep.subr.mxu0 0.0
  %708 = vmatpush1.msra.mxu0 0.0
  %709 = vmatprep.subr.mxu0 0.0
  %710 = vmatpush1.msra.mxu0 0.0
  %711 = vmatprep.subr.mxu0 0.0
  %712 = vmatpush1.msra.mxu0 0.0
  %713 = vmatprep.subr.mxu0 0.0
  %714 = vmatpush1.msra.mxu0 0.0
  %715 = vmatprep.subr.mxu0 0.0
  %716 = vmatpush1.msra.mxu0 0.0
  %717 = vmatprep.subr.mxu0 0.0
  %718 = vmatpush1.msra.mxu0 0.0
  %719 = vmatprep.subr.mxu0 0.0
  %720 = vmatpush1.msra.mxu0 0.0
  %721 = vmatprep.subr.mxu0 0.0
  %722 = vmatpush1.msra.mxu0 0.0
  %723 = vmatprep.subr.mxu0 0.0
  %724 = vmatpush1.msra.mxu0 0.0
  %725 = vmatprep.subr.mxu0 0.0
  %726 = vmatpush1.msra.mxu0 0.0
  %727 = vmatprep.subr.mxu0 0.0
  %728 = vmatpush1.msra.mxu0 0.0
  %729 = vmatprep.subr.mxu0 0.0
  %730 = vmatpush1.msra.mxu0 0.0
  %731 = vmatprep.subr.mxu0 0.0
  %732 = vmatpush1.msra.mxu0 0.0
  %733 = vmatprep.subr.mxu0 0.0
  %734 = vmatpush1.msra.mxu0 0.0
  %735 = vmatprep.mubr.f32.mxu0 0.0
  %736 = vmatmul.mubr.f32.gmra.mrb[0].mxu0 %v576
  %v737 = vpop.f32.mrb[0].mxu0
  %v738 = vadd.f32 %v574, %v737
  %v739 = vpop.f32.mrb[0].mxu0
  %740 = vmatprep.mubr.f32.mxu0 0.0
  %741 = vmatmul.mubr.f32.gmra.mrb[0].mxu0 %v579
  %v742 = vpop.f32.mrb[0].mxu0
  %v743 = vadd.f32 %v574, %v742
  %v744 = vpop.f32.mrb[0].mxu0
  %745 = vmatprep.mubr.f32.mxu0 0.0
  %746 = vmatmul.mubr.f32.gmra.mrb[0].mxu0 %v582
  %v747 = vpop.f32.mrb[0].mxu0
  %v748 = vadd.f32 %v574, %v747
  %v749 = vpop.f32.mrb[0].mxu0
  %750 = vmatprep.mubr.f32.mxu0 0.0
  %751 = vmatmul.mubr.f32.gmra.mrb[0].mxu0 %v585
  %v752 = vpop.f32.mrb[0].mxu0
  %v753 = vadd.f32 %v574, %v752
  %v754 = vpop.f32.mrb[0].mxu0
  %755 = vmatprep.mubr.f32.mxu0 0.0
  %756 = vmatmul.mubr.f32.gmra.mrb[0].mxu0 %v588
  %v757 = vpop.f32.mrb[0].mxu0
  %v758 = vadd.f32 %v574, %v757
  %v759 = vpop.f32.mrb[0].mxu0
  %760 = vmatprep.mubr.f32.mxu0 0.0
  %761 = vmatmul.mubr.f32.gmra.mrb[0].mxu0 %v591
  %v762 = vpop.f32.mrb[0].mxu0
  %v763 = vadd.f32 %v574, %v762
  %v764 = vpop.f32.mrb[0].mxu0
  %765 = vmatprep.mubr.f32.mxu0 0.0
  %766 = vmatmul.mubr.f32.gmra.mrb[0].mxu0 %v594
  %v767 = vpop.f32.mrb[0].mxu0
  %v768 = vadd.f32 %v574, %v767
  %v769 = vpop.f32.mrb[0].mxu0
  %770 = vmatprep.mubr.f32.mxu0 0.0
  %771 = vmatmul.mubr.f32.gmra.mrb[0].mxu0 %v597
  %v772 = vpop.f32.mrb[0].mxu0
  %v773 = vadd.f32 %v574, %v772
  %v774 = vpop.f32.mrb[0].mxu0
  %775 = vmatprep.mubr.f32.mxu0 0.0
  %776 = vmatmul.mubr.f32.gmra.mrb[0].mxu0 %v600
  %v777 = vpop.f32.mrb[0].mxu0
  %v778 = vadd.f32 %v574, %v777
  %v779 = vpop.f32.mrb[0].mxu0
  %780 = vmatprep.mubr.f32.mxu0 0.0
  %781 = vmatmul.mubr.f32.gmra.mrb[0].mxu0 %v603
  %v782 = vpop.f32.mrb[0].mxu0
  %v783 = vadd.f32 %v574, %v782
  %v784 = vpop.f32.mrb[0].mxu0
  %785 = vmatprep.mubr.f32.mxu0 0.0
  %786 = vmatmul.mubr.f32.gmra.mrb[0].mxu0 %v606
  %v787 = vpop.f32.mrb[0].mxu0
  %v788 = vadd.f32 %v574, %v787
  %v789 = vpop.f32.mrb[0].mxu0
  %790 = vmatprep.mubr.f32.mxu0 0.0
  %791 = vmatmul.mubr.f32.gmra.mrb[0].mxu0 %v609
  %v792 = vpop.f32.mrb[0].mxu0
  %v793 = vadd.f32 %v574, %v792
  %v794 = vpop.f32.mrb[0].mxu0
  %795 = vmatprep.mubr.f32.mxu0 0.0
  %796 = vmatmul.mubr.f32.gmra.mrb[0].mxu0 %v612
  %v797 = vpop.f32.mrb[0].mxu0
  %v798 = vadd.f32 %v574, %v797
  %v799 = vpop.f32.mrb[0].mxu0
  %800 = vmatprep.mubr.f32.mxu0 0.0
  %801 = vmatmul.mubr.f32.gmra.mrb[0].mxu0 %v615
  %v802 = vpop.f32.mrb[0].mxu0
  %v803 = vadd.f32 %v574, %v802
  %v804 = vpop.f32.mrb[0].mxu0
  %805 = vmatprep.mubr.f32.mxu0 0.0
  %806 = vmatmul.mubr.f32.gmra.mrb[0].mxu0 %v618
  %v807 = vpop.f32.mrb[0].mxu0
  %v808 = vadd.f32 %v574, %v807
  %v809 = vpop.f32.mrb[0].mxu0
  %810 = vmatprep.mubr.f32.mxu0 0.0
  %811 = vmatmul.mubr.f32.gmra.mrb[0].mxu0 %v621
  %v812 = vpop.f32.mrb[0].mxu0
  %v813 = vadd.f32 %v574, %v812
  %v814 = vpop.f32.mrb[0].mxu0
  %815 = vmatprep.mubr.f32.mxu0 0.0
  %816 = vmatmul.mubr.f32.gmra.mrb[0].mxu0 %v624
  %v817 = vpop.f32.mrb[0].mxu0
  %v818 = vadd.f32 %v574, %v817
  %v819 = vpop.f32.mrb[0].mxu0
  %820 = vmatprep.mubr.f32.mxu0 0.0
  %821 = vmatmul.mubr.f32.gmra.mrb[0].mxu0 %v627
  %v822 = vpop.f32.mrb[0].mxu0
  %v823 = vadd.f32 %v574, %v822
  %v824 = vpop.f32.mrb[0].mxu0
  %825 = vmatprep.mubr.f32.mxu0 0.0
  %826 = vmatmul.mubr.f32.gmra.mrb[0].mxu0 %v630
  %v827 = vpop.f32.mrb[0].mxu0
  %v828 = vadd.f32 %v574, %v827
  %v829 = vpop.f32.mrb[0].mxu0
  %830 = vmatprep.mubr.f32.mxu0 0.0
  %831 = vmatmul.mubr.f32.gmra.mrb[0].mxu0 %v633
  %v832 = vpop.f32.mrb[0].mxu0
  %v833 = vadd.f32 %v574, %v832
  %v834 = vpop.f32.mrb[0].mxu0
  %835 = vmatprep.mubr.f32.mxu0 0.0
  %836 = vmatmul.mubr.f32.gmra.mrb[0].mxu0 %v636
  %v837 = vpop.f32.mrb[0].mxu0
  %v838 = vadd.f32 %v574, %v837
  %v839 = vpop.f32.mrb[0].mxu0
  %840 = vmatprep.mubr.f32.mxu0 0.0
  %841 = vmatmul.mubr.f32.gmra.mrb[0].mxu0 %v639
  %v842 = vpop.f32.mrb[0].mxu0
  %v843 = vadd.f32 %v574, %v842
  %v844 = vpop.f32.mrb[0].mxu0
  %845 = vmatprep.mubr.f32.mxu0 0.0
  %846 = vmatmul.mubr.f32.gmra.mrb[0].mxu0 %v642
  %v847 = vpop.f32.mrb[0].mxu0
  %v848 = vadd.f32 %v574, %v847
  %v849 = vpop.f32.mrb[0].mxu0
  %850 = vmatprep.mubr.f32.mxu0 0.0
  %851 = vmatmul.mubr.f32.gmra.mrb[0].mxu0 %v645
  %v852 = vpop.f32.mrb[0].mxu0
  %v853 = vadd.f32 %v574, %v852
  %v854 = vpop.f32.mrb[0].mxu0
  %855 = vmatprep.mubr.f32.mxu0 0.0
  %856 = vmatmul.mubr.f32.gmra.mrb[0].mxu0 %v648
  %v857 = vpop.f32.mrb[0].mxu0
  %v858 = vadd.f32 %v574, %v857
  %v859 = vpop.f32.mrb[0].mxu0
  %860 = vmatprep.mubr.f32.mxu0 0.0
  %861 = vmatmul.mubr.f32.gmra.mrb[0].mxu0 %v651
  %v862 = vpop.f32.mrb[0].mxu0
  %v863 = vadd.f32 %v574, %v862
  %v864 = vpop.f32.mrb[0].mxu0
  %865 = vmatprep.mubr.f32.mxu0 0.0
  %866 = vmatmul.mubr.f32.gmra.mrb[0].mxu0 %v654
  %v867 = vpop.f32.mrb[0].mxu0
  %v868 = vadd.f32 %v574, %v867
  %v869 = vpop.f32.mrb[0].mxu0
  %870 = vmatprep.mubr.f32.mxu0 0.0
  %871 = vmatmul.mubr.f32.gmra.mrb[0].mxu0 %v657
  %v872 = vpop.f32.mrb[0].mxu0
  %v873 = vadd.f32 %v574, %v872
  %v874 = vpop.f32.mrb[0].mxu0
  %875 = vmatprep.mubr.f32.mxu0 0.0
  %876 = vmatmul.mubr.f32.gmra.mrb[0].mxu0 %v660
  %v877 = vpop.f32.mrb[0].mxu0
  %v878 = vadd.f32 %v574, %v877
  %v879 = vpop.f32.mrb[0].mxu0
  %880 = vmatprep.mubr.f32.mxu0 0.0
  %881 = vmatmul.mubr.f32.gmra.mrb[0].mxu0 %v663
  %v882 = vpop.f32.mrb[0].mxu0
  %v883 = vadd.f32 %v574, %v882
  %v884 = vpop.f32.mrb[0].mxu0
  %885 = vmatprep.mubr.f32.mxu0 0.0
  %886 = vmatmul.mubr.f32.gmra.mrb[0].mxu0 %v666
  %v887 = vpop.f32.mrb[0].mxu0
  %v888 = vadd.f32 %v574, %v887
  %v889 = vpop.f32.mrb[0].mxu0
  %890 = vmatprep.mubr.f32.mxu0 0.0
  %891 = vmatmul.mubr.f32.gmra.mrb[0].mxu0 %v669
  %v892 = vpop.f32.mrb[0].mxu0
  %v893 = vadd.f32 %v574, %v892
  %v894 = vpop.f32.mrb[0].mxu0
  %895 = vdwg.mxu0
  %vm896 = vcmp.gt.f32.partialorder %v738, 0.0
  %vm897 = vcmp.gt.f32.partialorder %v743, 0.0
  %vm898 = vcmp.gt.f32.partialorder %v748, 0.0
  %vm899 = vcmp.gt.f32.partialorder %v753, 0.0
  %vm900 = vcmp.gt.f32.partialorder %v758, 0.0
  %vm901 = vcmp.gt.f32.partialorder %v763, 0.0
  %vm902 = vcmp.gt.f32.partialorder %v768, 0.0
  %vm903 = vcmp.gt.f32.partialorder %v773, 0.0
  %vm904 = vcmp.gt.f32.partialorder %v778, 0.0
  %vm905 = vcmp.gt.f32.partialorder %v783, 0.0
  %vm906 = vcmp.gt.f32.partialorder %v788, 0.0
  %vm907 = vcmp.gt.f32.partialorder %v793, 0.0
  %vm908 = vcmp.gt.f32.partialorder %v798, 0.0
  %vm909 = vcmp.gt.f32.partialorder %v803, 0.0
  %vm910 = vcmp.gt.f32.partialorder %v808, 0.0
  %vm911 = vcmp.gt.f32.partialorder %v813, 0.0
  %vm912 = vcmp.gt.f32.partialorder %v818, 0.0
  %vm913 = vcmp.gt.f32.partialorder %v823, 0.0
  %vm914 = vcmp.gt.f32.partialorder %v828, 0.0
  %vm915 = vcmp.gt.f32.partialorder %v833, 0.0
  %vm916 = vcmp.gt.f32.partialorder %v838, 0.0
  %vm917 = vcmp.gt.f32.partialorder %v843, 0.0
  %vm918 = vcmp.gt.f32.partialorder %v848, 0.0
  %vm919 = vcmp.gt.f32.partialorder %v853, 0.0
  %vm920 = vcmp.gt.f32.partialorder %v858, 0.0
  %vm921 = vcmp.gt.f32.partialorder %v863, 0.0
  %vm922 = vcmp.gt.f32.partialorder %v868, 0.0
  %vm923 = vcmp.gt.f32.partialorder %v873, 0.0
  %vm924 = vcmp.gt.f32.partialorder %v878, 0.0
  %vm925 = vcmp.gt.f32.partialorder %v883, 0.0
  %vm926 = vcmp.gt.f32.partialorder %v888, 0.0
  %vm927 = vcmp.gt.f32.partialorder %v893, 0.0
  %v928 = vmin.f32 %v738, 0.0
  %v929 = vmin.f32 %v743, 0.0
  %v930 = vmin.f32 %v748, 0.0
  %v931 = vmin.f32 %v753, 0.0
  %v932 = vmin.f32 %v758, 0.0
  %v933 = vmin.f32 %v763, 0.0
  %v934 = vmin.f32 %v768, 0.0
  %v935 = vmin.f32 %v773, 0.0
  %v936 = vmin.f32 %v778, 0.0
  %v937 = vmin.f32 %v783, 0.0
  %v938 = vmin.f32 %v788, 0.0
  %v939 = vmin.f32 %v793, 0.0
  %v940 = vmin.f32 %v798, 0.0
  %v941 = vmin.f32 %v803, 0.0
  %v942 = vmin.f32 %v808, 0.0
  %v943 = vmin.f32 %v813, 0.0
  %v944 = vmin.f32 %v818, 0.0
  %v945 = vmin.f32 %v823, 0.0
  %v946 = vmin.f32 %v828, 0.0
  %v947 = vmin.f32 %v833, 0.0
  %v948 = vmin.f32 %v838, 0.0
  %v949 = vmin.f32 %v843, 0.0
  %v950 = vmin.f32 %v848, 0.0
  %v951 = vmin.f32 %v853, 0.0
  %v952 = vmin.f32 %v858, 0.0
  %v953 = vmin.f32 %v863, 0.0
  %v954 = vmin.f32 %v868, 0.0
  %v955 = vmin.f32 %v873, 0.0
  %v956 = vmin.f32 %v878, 0.0
  %v957 = vmin.f32 %v883, 0.0
  %v958 = vmin.f32 %v888, 0.0
  %v959 = vmin.f32 %v893, 0.0
  %v960 = vmul.f32 %v928, 1.442695
  %v961 = vpow.pop %v960
  %v962 = vmul.f32 %v929, 1.442695
  %v963 = vpow.pop %v962
  %v964 = vmul.f32 %v930, 1.442695
  %v965 = vpow.pop %v964
  %v966 = vmul.f32 %v931, 1.442695
  %v967 = vpow.pop %v966
  %v968 = vmul.f32 %v932, 1.442695
  %v969 = vpow.pop %v968
  %v970 = vmul.f32 %v933, 1.442695
  %v971 = vpow.pop %v970
  %v972 = vmul.f32 %v934, 1.442695
  %v973 = vpow.pop %v972
  %v974 = vmul.f32 %v935, 1.442695
  %v975 = vpow.pop %v974
  %v976 = vmul.f32 %v936, 1.442695
  %v977 = vpow.pop %v976
  %v978 = vmul.f32 %v937, 1.442695
  %v979 = vpow.pop %v978
  %v980 = vmul.f32 %v938, 1.442695
  %v981 = vpow.pop %v980
  %v982 = vmul.f32 %v939, 1.442695
  %v983 = vpow.pop %v982
  %v984 = vmul.f32 %v940, 1.442695
  %v985 = vpow.pop %v984
  %v986 = vmul.f32 %v941, 1.442695
  %v987 = vpow.pop %v986
  %v988 = vmul.f32 %v942, 1.442695
  %v989 = vpow.pop %v988
  %v990 = vmul.f32 %v943, 1.442695
  %v991 = vpow.pop %v990
  %v992 = vmul.f32 %v944, 1.442695
  %v993 = vpow.pop %v992
  %v994 = vmul.f32 %v945, 1.442695
  %v995 = vpow.pop %v994
  %v996 = vmul.f32 %v946, 1.442695
  %v997 = vpow.pop %v996
  %v998 = vmul.f32 %v947, 1.442695
  %v999 = vpow.pop %v998
  %v1000 = vmul.f32 %v948, 1.442695
  %v1001 = vpow.pop %v1000
  %v1002 = vmul.f32 %v949, 1.442695
  %v1003 = vpow.pop %v1002
  %v1004 = vmul.f32 %v950, 1.442695
  %v1005 = vpow.pop %v1004
  %v1006 = vmul.f32 %v951, 1.442695
  %v1007 = vpow.pop %v1006
  %v1008 = vmul.f32 %v952, 1.442695
  %v1009 = vpow.pop %v1008
  %v1010 = vmul.f32 %v953, 1.442695
  %v1011 = vpow.pop %v1010
  %v1012 = vmul.f32 %v954, 1.442695
  %v1013 = vpow.pop %v1012
  %v1014 = vmul.f32 %v955, 1.442695
  %v1015 = vpow.pop %v1014
  %v1016 = vmul.f32 %v956, 1.442695
  %v1017 = vpow.pop %v1016
  %v1018 = vmul.f32 %v957, 1.442695
  %v1019 = vpow.pop %v1018
  %v1020 = vmul.f32 %v958, 1.442695
  %v1021 = vpow.pop %v1020
  %v1022 = vmul.f32 %v959, 1.442695
  %v1023 = vpow.pop %v1022
  %v1024 = vsub.f32 %v961, 1.0
  %v1025 = vsub.f32 %v963, 1.0
  %v1026 = vsub.f32 %v965, 1.0
  %v1027 = vsub.f32 %v967, 1.0
  %v1028 = vsub.f32 %v969, 1.0
  %v1029 = vsub.f32 %v971, 1.0
  %v1030 = vsub.f32 %v973, 1.0
  %v1031 = vsub.f32 %v975, 1.0
  %v1032 = vsub.f32 %v977, 1.0
  %v1033 = vsub.f32 %v979, 1.0
  %v1034 = vsub.f32 %v981, 1.0
  %v1035 = vsub.f32 %v983, 1.0
  %v1036 = vsub.f32 %v985, 1.0
  %v1037 = vsub.f32 %v987, 1.0
  %v1038 = vsub.f32 %v989, 1.0
  %v1039 = vsub.f32 %v991, 1.0
  %v1040 = vsub.f32 %v993, 1.0
  %v1041 = vsub.f32 %v995, 1.0
  %v1042 = vsub.f32 %v997, 1.0
  %v1043 = vsub.f32 %v999, 1.0
  %v1044 = vsub.f32 %v1001, 1.0
  %v1045 = vsub.f32 %v1003, 1.0
  %v1046 = vsub.f32 %v1005, 1.0
  %v1047 = vsub.f32 %v1007, 1.0
  %v1048 = vsub.f32 %v1009, 1.0
  %v1049 = vsub.f32 %v1011, 1.0
  %v1050 = vsub.f32 %v1013, 1.0
  %v1051 = vsub.f32 %v1015, 1.0
  %v1052 = vsub.f32 %v1017, 1.0
  %v1053 = vsub.f32 %v1019, 1.0
  %v1054 = vsub.f32 %v1021, 1.0
  %v1055 = vsub.f32 %v1023, 1.0
  %v1056 = vsel %vm896, %v738, %v1024
  %v1057 = vsel %vm897, %v743, %v1025
  %v1058 = vsel %vm898, %v748, %v1026
  %v1059 = vsel %vm899, %v753, %v1027
  %v1060 = vsel %vm900, %v758, %v1028
  %v1061 = vsel %vm901, %v763, %v1029
  %v1062 = vsel %vm902, %v768, %v1030
  %v1063 = vsel %vm903, %v773, %v1031
  %v1064 = vsel %vm904, %v778, %v1032
  %v1065 = vsel %vm905, %v783, %v1033
  %v1066 = vsel %vm906, %v788, %v1034
  %v1067 = vsel %vm907, %v793, %v1035
  %v1068 = vsel %vm908, %v798, %v1036
  %v1069 = vsel %vm909, %v803, %v1037
  %v1070 = vsel %vm910, %v808, %v1038
  %v1071 = vsel %vm911, %v813, %v1039
  %v1072 = vsel %vm912, %v818, %v1040
  %v1073 = vsel %vm913, %v823, %v1041
  %v1074 = vsel %vm914, %v828, %v1042
  %v1075 = vsel %vm915, %v833, %v1043
  %v1076 = vsel %vm916, %v838, %v1044
  %v1077 = vsel %vm917, %v843, %v1045
  %v1078 = vsel %vm918, %v848, %v1046
  %v1079 = vsel %vm919, %v853, %v1047
  %v1080 = vsel %vm920, %v858, %v1048
  %v1081 = vsel %vm921, %v863, %v1049
  %v1082 = vsel %vm922, %v868, %v1050
  %v1083 = vsel %vm923, %v873, %v1051
  %v1084 = vsel %vm924, %v878, %v1052
  %v1085 = vsel %vm925, %v883, %v1053
  %v1086 = vsel %vm926, %v888, %v1054
  %v1087 = vsel %vm927, %v893, %v1055
  %v1088 = vld [vmem:[%s1 + $0x40] sm:$0xff]
  %v1089 = vld [vmem:[%s1 + $0x48] sm:$0xff]
  %v1090 = vld [vmem:[%s1 + $0x50] sm:$0xff]
  %v1091 = vld [vmem:[%s1 + $0x58] sm:$0xff]
  %v1092 = vld [vmem:[%s1 + $0xa2] sm:$0x1]
  %v1093 = vlaneseq
  %v1094 = vshrl.u32 %v1093, 7
  %v1095 = vsub.s32 0, %v1094
  %v1096 = vrot.slane %v1092, %v1095
  %v1098 = vsel %vm52, %v1056, 0
  %v1101 = vsel %vm52, %v1057, 0
  %v1104 = vsel %vm52, %v1058, 0
  %v1107 = vsel %vm52, %v1059, 0
  %v1110 = vsel %vm52, %v1060, 0
  %v1113 = vsel %vm52, %v1061, 0
  %v1116 = vsel %vm52, %v1062, 0
  %v1119 = vsel %vm52, %v1063, 0
  %v1122 = vsel %vm52, %v1064, 0
  %v1125 = vsel %vm52, %v1065, 0
  %v1128 = vsel %vm52, %v1066, 0
  %v1131 = vsel %vm52, %v1067, 0
  %v1134 = vsel %vm52, %v1068, 0
  %v1137 = vsel %vm52, %v1069, 0
  %v1140 = vsel %vm52, %v1070, 0
  %v1143 = vsel %vm52, %v1071, 0
  %v1146 = vsel %vm52, %v1072, 0
  %v1149 = vsel %vm52, %v1073, 0
  %v1152 = vsel %vm52, %v1074, 0
  %v1155 = vsel %vm52, %v1075, 0
  %v1158 = vsel %vm52, %v1076, 0
  %v1161 = vsel %vm52, %v1077, 0
  %v1164 = vsel %vm52, %v1078, 0
  %v1167 = vsel %vm52, %v1079, 0
  %v1170 = vsel %vm52, %v1080, 0
  %v1173 = vsel %vm52, %v1081, 0
  %v1176 = vsel %vm52, %v1082, 0
  %v1179 = vsel %vm52, %v1083, 0
  %v1182 = vsel %vm52, %v1084, 0
  %v1185 = vsel %vm52, %v1085, 0
  %v1188 = vsel %vm52, %v1086, 0
  %v1191 = vsel %vm52, %v1087, 0
  %1193 = vmatprep.subr.mxu0 0.0
  %1194 = vmatpush1.msra.mxu0 %v1088
  %1195 = vmatprep.subr.mxu0 0.0
  %1196 = vmatpush1.msra.mxu0 %v1089
  %1197 = vmatprep.subr.mxu0 0.0
  %1198 = vmatpush1.msra.mxu0 %v1090
  %1199 = vmatprep.subr.mxu0 0.0
  %1200 = vmatpush1.msra.mxu0 %v1091
  %1201 = vmatprep.subr.mxu0 0.0
  %1202 = vmatpush1.msra.mxu0 0.0
  %1203 = vmatprep.subr.mxu0 0.0
  %1204 = vmatpush1.msra.mxu0 0.0
  %1205 = vmatprep.subr.mxu0 0.0
  %1206 = vmatpush1.msra.mxu0 0.0
  %1207 = vmatprep.subr.mxu0 0.0
  %1208 = vmatpush1.msra.mxu0 0.0
  %1209 = vmatprep.subr.mxu0 0.0
  %1210 = vmatpush1.msra.mxu0 0.0
  %1211 = vmatprep.subr.mxu0 0.0
  %1212 = vmatpush1.msra.mxu0 0.0
  %1213 = vmatprep.subr.mxu0 0.0
  %1214 = vmatpush1.msra.mxu0 0.0
  %1215 = vmatprep.subr.mxu0 0.0
  %1216 = vmatpush1.msra.mxu0 0.0
  %1217 = vmatprep.subr.mxu0 0.0
  %1218 = vmatpush1.msra.mxu0 0.0
  %1219 = vmatprep.subr.mxu0 0.0
  %1220 = vmatpush1.msra.mxu0 0.0
  %1221 = vmatprep.subr.mxu0 0.0
  %1222 = vmatpush1.msra.mxu0 0.0
  %1223 = vmatprep.subr.mxu0 0.0
  %1224 = vmatpush1.msra.mxu0 0.0
  %1225 = vmatprep.subr.mxu0 0.0
  %1226 = vmatpush1.msra.mxu0 0.0
  %1227 = vmatprep.subr.mxu0 0.0
  %1228 = vmatpush1.msra.mxu0 0.0
  %1229 = vmatprep.subr.mxu0 0.0
  %1230 = vmatpush1.msra.mxu0 0.0
  %1231 = vmatprep.subr.mxu0 0.0
  %1232 = vmatpush1.msra.mxu0 0.0
  %1233 = vmatprep.subr.mxu0 0.0
  %1234 = vmatpush1.msra.mxu0 0.0
  %1235 = vmatprep.subr.mxu0 0.0
  %1236 = vmatpush1.msra.mxu0 0.0
  %1237 = vmatprep.subr.mxu0 0.0
  %1238 = vmatpush1.msra.mxu0 0.0
  %1239 = vmatprep.subr.mxu0 0.0
  %1240 = vmatpush1.msra.mxu0 0.0
  %1241 = vmatprep.subr.mxu0 0.0
  %1242 = vmatpush1.msra.mxu0 0.0
  %1243 = vmatprep.subr.mxu0 0.0
  %1244 = vmatpush1.msra.mxu0 0.0
  %1245 = vmatprep.subr.mxu0 0.0
  %1246 = vmatpush1.msra.mxu0 0.0
  %1247 = vmatprep.subr.mxu0 0.0
  %1248 = vmatpush1.msra.mxu0 0.0
  %1249 = vmatprep.subr.mxu0 0.0
  %1250 = vmatpush1.msra.mxu0 0.0
  %1251 = vmatprep.subr.mxu0 0.0
  %1252 = vmatpush1.msra.mxu0 0.0
  %1253 = vmatprep.subr.mxu0 0.0
  %1254 = vmatpush1.msra.mxu0 0.0
  %1255 = vmatprep.subr.mxu0 0.0
  %1256 = vmatpush1.msra.mxu0 0.0
  %1257 = vmatprep.mubr.f32.mxu0 0.0
  %1258 = vmatmul.mubr.f32.gmra.mrb[0].mxu0 %v1098
  %v1259 = vpop.f32.mrb[0].mxu0
  %v1260 = vadd.f32 %v1096, %v1259
  %v1261 = vpop.f32.mrb[0].mxu0
  %1262 = vmatprep.mubr.f32.mxu0 0.0
  %1263 = vmatmul.mubr.f32.gmra.mrb[0].mxu0 %v1101
  %v1264 = vpop.f32.mrb[0].mxu0
  %v1265 = vadd.f32 %v1096, %v1264
  %v1266 = vpop.f32.mrb[0].mxu0
  %1267 = vmatprep.mubr.f32.mxu0 0.0
  %1268 = vmatmul.mubr.f32.gmra.mrb[0].mxu0 %v1104
  %v1269 = vpop.f32.mrb[0].mxu0
  %v1270 = vadd.f32 %v1096, %v1269
  %v1271 = vpop.f32.mrb[0].mxu0
  %1272 = vmatprep.mubr.f32.mxu0 0.0
  %1273 = vmatmul.mubr.f32.gmra.mrb[0].mxu0 %v1107
  %v1274 = vpop.f32.mrb[0].mxu0
  %v1275 = vadd.f32 %v1096, %v1274
  %v1276 = vpop.f32.mrb[0].mxu0
  %1277 = vmatprep.mubr.f32.mxu0 0.0
  %1278 = vmatmul.mubr.f32.gmra.mrb[0].mxu0 %v1110
  %v1279 = vpop.f32.mrb[0].mxu0
  %v1280 = vadd.f32 %v1096, %v1279
  %v1281 = vpop.f32.mrb[0].mxu0
  %1282 = vmatprep.mubr.f32.mxu0 0.0
  %1283 = vmatmul.mubr.f32.gmra.mrb[0].mxu0 %v1113
  %v1284 = vpop.f32.mrb[0].mxu0
  %v1285 = vadd.f32 %v1096, %v1284
  %v1286 = vpop.f32.mrb[0].mxu0
  %1287 = vmatprep.mubr.f32.mxu0 0.0
  %1288 = vmatmul.mubr.f32.gmra.mrb[0].mxu0 %v1116
  %v1289 = vpop.f32.mrb[0].mxu0
  %v1290 = vadd.f32 %v1096, %v1289
  %v1291 = vpop.f32.mrb[0].mxu0
  %1292 = vmatprep.mubr.f32.mxu0 0.0
  %1293 = vmatmul.mubr.f32.gmra.mrb[0].mxu0 %v1119
  %v1294 = vpop.f32.mrb[0].mxu0
  %v1295 = vadd.f32 %v1096, %v1294
  %v1296 = vpop.f32.mrb[0].mxu0
  %1297 = vmatprep.mubr.f32.mxu0 0.0
  %1298 = vmatmul.mubr.f32.gmra.mrb[0].mxu0 %v1122
  %v1299 = vpop.f32.mrb[0].mxu0
  %v1300 = vadd.f32 %v1096, %v1299
  %v1301 = vpop.f32.mrb[0].mxu0
  %1302 = vmatprep.mubr.f32.mxu0 0.0
  %1303 = vmatmul.mubr.f32.gmra.mrb[0].mxu0 %v1125
  %v1304 = vpop.f32.mrb[0].mxu0
  %v1305 = vadd.f32 %v1096, %v1304
  %v1306 = vpop.f32.mrb[0].mxu0
  %1307 = vmatprep.mubr.f32.mxu0 0.0
  %1308 = vmatmul.mubr.f32.gmra.mrb[0].mxu0 %v1128
  %v1309 = vpop.f32.mrb[0].mxu0
  %v1310 = vadd.f32 %v1096, %v1309
  %v1311 = vpop.f32.mrb[0].mxu0
  %1312 = vmatprep.mubr.f32.mxu0 0.0
  %1313 = vmatmul.mubr.f32.gmra.mrb[0].mxu0 %v1131
  %v1314 = vpop.f32.mrb[0].mxu0
  %v1315 = vadd.f32 %v1096, %v1314
  %v1316 = vpop.f32.mrb[0].mxu0
  %1317 = vmatprep.mubr.f32.mxu0 0.0
  %1318 = vmatmul.mubr.f32.gmra.mrb[0].mxu0 %v1134
  %v1319 = vpop.f32.mrb[0].mxu0
  %v1320 = vadd.f32 %v1096, %v1319
  %v1321 = vpop.f32.mrb[0].mxu0
  %1322 = vmatprep.mubr.f32.mxu0 0.0
  %1323 = vmatmul.mubr.f32.gmra.mrb[0].mxu0 %v1137
  %v1324 = vpop.f32.mrb[0].mxu0
  %v1325 = vadd.f32 %v1096, %v1324
  %v1326 = vpop.f32.mrb[0].mxu0
  %1327 = vmatprep.mubr.f32.mxu0 0.0
  %1328 = vmatmul.mubr.f32.gmra.mrb[0].mxu0 %v1140
  %v1329 = vpop.f32.mrb[0].mxu0
  %v1330 = vadd.f32 %v1096, %v1329
  %v1331 = vpop.f32.mrb[0].mxu0
  %1332 = vmatprep.mubr.f32.mxu0 0.0
  %1333 = vmatmul.mubr.f32.gmra.mrb[0].mxu0 %v1143
  %v1334 = vpop.f32.mrb[0].mxu0
  %v1335 = vadd.f32 %v1096, %v1334
  %v1336 = vpop.f32.mrb[0].mxu0
  %1337 = vmatprep.mubr.f32.mxu0 0.0
  %1338 = vmatmul.mubr.f32.gmra.mrb[0].mxu0 %v1146
  %v1339 = vpop.f32.mrb[0].mxu0
  %v1340 = vadd.f32 %v1096, %v1339
  %v1341 = vpop.f32.mrb[0].mxu0
  %1342 = vmatprep.mubr.f32.mxu0 0.0
  %1343 = vmatmul.mubr.f32.gmra.mrb[0].mxu0 %v1149
  %v1344 = vpop.f32.mrb[0].mxu0
  %v1345 = vadd.f32 %v1096, %v1344
  %v1346 = vpop.f32.mrb[0].mxu0
  %1347 = vmatprep.mubr.f32.mxu0 0.0
  %1348 = vmatmul.mubr.f32.gmra.mrb[0].mxu0 %v1152
  %v1349 = vpop.f32.mrb[0].mxu0
  %v1350 = vadd.f32 %v1096, %v1349
  %v1351 = vpop.f32.mrb[0].mxu0
  %1352 = vmatprep.mubr.f32.mxu0 0.0
  %1353 = vmatmul.mubr.f32.gmra.mrb[0].mxu0 %v1155
  %v1354 = vpop.f32.mrb[0].mxu0
  %v1355 = vadd.f32 %v1096, %v1354
  %v1356 = vpop.f32.mrb[0].mxu0
  %1357 = vmatprep.mubr.f32.mxu0 0.0
  %1358 = vmatmul.mubr.f32.gmra.mrb[0].mxu0 %v1158
  %v1359 = vpop.f32.mrb[0].mxu0
  %v1360 = vadd.f32 %v1096, %v1359
  %v1361 = vpop.f32.mrb[0].mxu0
  %1362 = vmatprep.mubr.f32.mxu0 0.0
  %1363 = vmatmul.mubr.f32.gmra.mrb[0].mxu0 %v1161
  %v1364 = vpop.f32.mrb[0].mxu0
  %v1365 = vadd.f32 %v1096, %v1364
  %v1366 = vpop.f32.mrb[0].mxu0
  %1367 = vmatprep.mubr.f32.mxu0 0.0
  %1368 = vmatmul.mubr.f32.gmra.mrb[0].mxu0 %v1164
  %v1369 = vpop.f32.mrb[0].mxu0
  %v1370 = vadd.f32 %v1096, %v1369
  %v1371 = vpop.f32.mrb[0].mxu0
  %1372 = vmatprep.mubr.f32.mxu0 0.0
  %1373 = vmatmul.mubr.f32.gmra.mrb[0].mxu0 %v1167
  %v1374 = vpop.f32.mrb[0].mxu0
  %v1375 = vadd.f32 %v1096, %v1374
  %v1376 = vpop.f32.mrb[0].mxu0
  %1377 = vmatprep.mubr.f32.mxu0 0.0
  %1378 = vmatmul.mubr.f32.gmra.mrb[0].mxu0 %v1170
  %v1379 = vpop.f32.mrb[0].mxu0
  %v1380 = vadd.f32 %v1096, %v1379
  %v1381 = vpop.f32.mrb[0].mxu0
  %1382 = vmatprep.mubr.f32.mxu0 0.0
  %1383 = vmatmul.mubr.f32.gmra.mrb[0].mxu0 %v1173
  %v1384 = vpop.f32.mrb[0].mxu0
  %v1385 = vadd.f32 %v1096, %v1384
  %v1386 = vpop.f32.mrb[0].mxu0
  %1387 = vmatprep.mubr.f32.mxu0 0.0
  %1388 = vmatmul.mubr.f32.gmra.mrb[0].mxu0 %v1176
  %v1389 = vpop.f32.mrb[0].mxu0
  %v1390 = vadd.f32 %v1096, %v1389
  %v1391 = vpop.f32.mrb[0].mxu0
  %1392 = vmatprep.mubr.f32.mxu0 0.0
  %1393 = vmatmul.mubr.f32.gmra.mrb[0].mxu0 %v1179
  %v1394 = vpop.f32.mrb[0].mxu0
  %v1395 = vadd.f32 %v1096, %v1394
  %v1396 = vpop.f32.mrb[0].mxu0
  %1397 = vmatprep.mubr.f32.mxu0 0.0
  %1398 = vmatmul.mubr.f32.gmra.mrb[0].mxu0 %v1182
  %v1399 = vpop.f32.mrb[0].mxu0
  %v1400 = vadd.f32 %v1096, %v1399
  %v1401 = vpop.f32.mrb[0].mxu0
  %1402 = vmatprep.mubr.f32.mxu0 0.0
  %1403 = vmatmul.mubr.f32.gmra.mrb[0].mxu0 %v1185
  %v1404 = vpop.f32.mrb[0].mxu0
  %v1405 = vadd.f32 %v1096, %v1404
  %v1406 = vpop.f32.mrb[0].mxu0
  %1407 = vmatprep.mubr.f32.mxu0 0.0
  %1408 = vmatmul.mubr.f32.gmra.mrb[0].mxu0 %v1188
  %v1409 = vpop.f32.mrb[0].mxu0
  %v1410 = vadd.f32 %v1096, %v1409
  %v1411 = vpop.f32.mrb[0].mxu0
  %1412 = vmatprep.mubr.f32.mxu0 0.0
  %1413 = vmatmul.mubr.f32.gmra.mrb[0].mxu0 %v1191
  %v1414 = vpop.f32.mrb[0].mxu0
  %v1415 = vadd.f32 %v1096, %v1414
  %v1416 = vpop.f32.mrb[0].mxu0
  %1417 = vdwg.mxu0
  %vm1418 = vcmp.gt.f32.partialorder %v1260, 0.0
  %vm1419 = vcmp.gt.f32.partialorder %v1265, 0.0
  %vm1420 = vcmp.gt.f32.partialorder %v1270, 0.0
  %vm1421 = vcmp.gt.f32.partialorder %v1275, 0.0
  %vm1422 = vcmp.gt.f32.partialorder %v1280, 0.0
  %vm1423 = vcmp.gt.f32.partialorder %v1285, 0.0
  %vm1424 = vcmp.gt.f32.partialorder %v1290, 0.0
  %vm1425 = vcmp.gt.f32.partialorder %v1295, 0.0
  %vm1426 = vcmp.gt.f32.partialorder %v1300, 0.0
  %vm1427 = vcmp.gt.f32.partialorder %v1305, 0.0
  %vm1428 = vcmp.gt.f32.partialorder %v1310, 0.0
  %vm1429 = vcmp.gt.f32.partialorder %v1315, 0.0
  %vm1430 = vcmp.gt.f32.partialorder %v1320, 0.0
  %vm1431 = vcmp.gt.f32.partialorder %v1325, 0.0
  %vm1432 = vcmp.gt.f32.partialorder %v1330, 0.0
  %vm1433 = vcmp.gt.f32.partialorder %v1335, 0.0
  %vm1434 = vcmp.gt.f32.partialorder %v1340, 0.0
  %vm1435 = vcmp.gt.f32.partialorder %v1345, 0.0
  %vm1436 = vcmp.gt.f32.partialorder %v1350, 0.0
  %vm1437 = vcmp.gt.f32.partialorder %v1355, 0.0
  %vm1438 = vcmp.gt.f32.partialorder %v1360, 0.0
  %vm1439 = vcmp.gt.f32.partialorder %v1365, 0.0
  %vm1440 = vcmp.gt.f32.partialorder %v1370, 0.0
  %vm1441 = vcmp.gt.f32.partialorder %v1375, 0.0
  %vm1442 = vcmp.gt.f32.partialorder %v1380, 0.0
  %vm1443 = vcmp.gt.f32.partialorder %v1385, 0.0
  %vm1444 = vcmp.gt.f32.partialorder %v1390, 0.0
  %vm1445 = vcmp.gt.f32.partialorder %v1395, 0.0
  %vm1446 = vcmp.gt.f32.partialorder %v1400, 0.0
  %vm1447 = vcmp.gt.f32.partialorder %v1405, 0.0
  %vm1448 = vcmp.gt.f32.partialorder %v1410, 0.0
  %vm1449 = vcmp.gt.f32.partialorder %v1415, 0.0
  %v1450 = vmin.f32 %v1260, 0.0
  %v1451 = vmin.f32 %v1265, 0.0
  %v1452 = vmin.f32 %v1270, 0.0
  %v1453 = vmin.f32 %v1275, 0.0
  %v1454 = vmin.f32 %v1280, 0.0
  %v1455 = vmin.f32 %v1285, 0.0
  %v1456 = vmin.f32 %v1290, 0.0
  %v1457 = vmin.f32 %v1295, 0.0
  %v1458 = vmin.f32 %v1300, 0.0
  %v1459 = vmin.f32 %v1305, 0.0
  %v1460 = vmin.f32 %v1310, 0.0
  %v1461 = vmin.f32 %v1315, 0.0
  %v1462 = vmin.f32 %v1320, 0.0
  %v1463 = vmin.f32 %v1325, 0.0
  %v1464 = vmin.f32 %v1330, 0.0
  %v1465 = vmin.f32 %v1335, 0.0
  %v1466 = vmin.f32 %v1340, 0.0
  %v1467 = vmin.f32 %v1345, 0.0
  %v1468 = vmin.f32 %v1350, 0.0
  %v1469 = vmin.f32 %v1355, 0.0
  %v1470 = vmin.f32 %v1360, 0.0
  %v1471 = vmin.f32 %v1365, 0.0
  %v1472 = vmin.f32 %v1370, 0.0
  %v1473 = vmin.f32 %v1375, 0.0
  %v1474 = vmin.f32 %v1380, 0.0
  %v1475 = vmin.f32 %v1385, 0.0
  %v1476 = vmin.f32 %v1390, 0.0
  %v1477 = vmin.f32 %v1395, 0.0
  %v1478 = vmin.f32 %v1400, 0.0
  %v1479 = vmin.f32 %v1405, 0.0
  %v1480 = vmin.f32 %v1410, 0.0
  %v1481 = vmin.f32 %v1415, 0.0
  %v1482 = vmul.f32 %v1450, 1.442695
  %v1483 = vpow.pop %v1482
  %v1484 = vmul.f32 %v1451, 1.442695
  %v1485 = vpow.pop %v1484
  %v1486 = vmul.f32 %v1452, 1.442695
  %v1487 = vpow.pop %v1486
  %v1488 = vmul.f32 %v1453, 1.442695
  %v1489 = vpow.pop %v1488
  %v1490 = vmul.f32 %v1454, 1.442695
  %v1491 = vpow.pop %v1490
  %v1492 = vmul.f32 %v1455, 1.442695
  %v1493 = vpow.pop %v1492
  %v1494 = vmul.f32 %v1456, 1.442695
  %v1495 = vpow.pop %v1494
  %v1496 = vmul.f32 %v1457, 1.442695
  %v1497 = vpow.pop %v1496
  %v1498 = vmul.f32 %v1458, 1.442695
  %v1499 = vpow.pop %v1498
  %v1500 = vmul.f32 %v1459, 1.442695
  %v1501 = vpow.pop %v1500
  %v1502 = vmul.f32 %v1460, 1.442695
  %v1503 = vpow.pop %v1502
  %v1504 = vmul.f32 %v1461, 1.442695
  %v1505 = vpow.pop %v1504
  %v1506 = vmul.f32 %v1462, 1.442695
  %v1507 = vpow.pop %v1506
  %v1508 = vmul.f32 %v1463, 1.442695
  %v1509 = vpow.pop %v1508
  %v1510 = vmul.f32 %v1464, 1.442695
  %v1511 = vpow.pop %v1510
  %v1512 = vmul.f32 %v1465, 1.442695
  %v1513 = vpow.pop %v1512
  %v1514 = vmul.f32 %v1466, 1.442695
  %v1515 = vpow.pop %v1514
  %v1516 = vmul.f32 %v1467, 1.442695
  %v1517 = vpow.pop %v1516
  %v1518 = vmul.f32 %v1468, 1.442695
  %v1519 = vpow.pop %v1518
  %v1520 = vmul.f32 %v1469, 1.442695
  %v1521 = vpow.pop %v1520
  %v1522 = vmul.f32 %v1470, 1.442695
  %v1523 = vpow.pop %v1522
  %v1524 = vmul.f32 %v1471, 1.442695
  %v1525 = vpow.pop %v1524
  %v1526 = vmul.f32 %v1472, 1.442695
  %v1527 = vpow.pop %v1526
  %v1528 = vmul.f32 %v1473, 1.442695
  %v1529 = vpow.pop %v1528
  %v1530 = vmul.f32 %v1474, 1.442695
  %v1531 = vpow.pop %v1530
  %v1532 = vmul.f32 %v1475, 1.442695
  %v1533 = vpow.pop %v1532
  %v1534 = vmul.f32 %v1476, 1.442695
  %v1535 = vpow.pop %v1534
  %v1536 = vmul.f32 %v1477, 1.442695
  %v1537 = vpow.pop %v1536
  %v1538 = vmul.f32 %v1478, 1.442695
  %v1539 = vpow.pop %v1538
  %v1540 = vmul.f32 %v1479, 1.442695
  %v1541 = vpow.pop %v1540
  %v1542 = vmul.f32 %v1480, 1.442695
  %v1543 = vpow.pop %v1542
  %v1544 = vmul.f32 %v1481, 1.442695
  %v1545 = vpow.pop %v1544
  %v1546 = vsub.f32 %v1483, 1.0
  %v1547 = vsub.f32 %v1485, 1.0
  %v1548 = vsub.f32 %v1487, 1.0
  %v1549 = vsub.f32 %v1489, 1.0
  %v1550 = vsub.f32 %v1491, 1.0
  %v1551 = vsub.f32 %v1493, 1.0
  %v1552 = vsub.f32 %v1495, 1.0
  %v1553 = vsub.f32 %v1497, 1.0
  %v1554 = vsub.f32 %v1499, 1.0
  %v1555 = vsub.f32 %v1501, 1.0
  %v1556 = vsub.f32 %v1503, 1.0
  %v1557 = vsub.f32 %v1505, 1.0
  %v1558 = vsub.f32 %v1507, 1.0
  %v1559 = vsub.f32 %v1509, 1.0
  %v1560 = vsub.f32 %v1511, 1.0
  %v1561 = vsub.f32 %v1513, 1.0
  %v1562 = vsub.f32 %v1515, 1.0
  %v1563 = vsub.f32 %v1517, 1.0
  %v1564 = vsub.f32 %v1519, 1.0
  %v1565 = vsub.f32 %v1521, 1.0
  %v1566 = vsub.f32 %v1523, 1.0
  %v1567 = vsub.f32 %v1525, 1.0
  %v1568 = vsub.f32 %v1527, 1.0
  %v1569 = vsub.f32 %v1529, 1.0
  %v1570 = vsub.f32 %v1531, 1.0
  %v1571 = vsub.f32 %v1533, 1.0
  %v1572 = vsub.f32 %v1535, 1.0
  %v1573 = vsub.f32 %v1537, 1.0
  %v1574 = vsub.f32 %v1539, 1.0
  %v1575 = vsub.f32 %v1541, 1.0
  %v1576 = vsub.f32 %v1543, 1.0
  %v1577 = vsub.f32 %v1545, 1.0
  %v1578 = vsel %vm1418, %v1260, %v1546
  %v1579 = vsel %vm1419, %v1265, %v1547
  %v1580 = vsel %vm1420, %v1270, %v1548
  %v1581 = vsel %vm1421, %v1275, %v1549
  %v1582 = vsel %vm1422, %v1280, %v1550
  %v1583 = vsel %vm1423, %v1285, %v1551
  %v1584 = vsel %vm1424, %v1290, %v1552
  %v1585 = vsel %vm1425, %v1295, %v1553
  %v1586 = vsel %vm1426, %v1300, %v1554
  %v1587 = vsel %vm1427, %v1305, %v1555
  %v1588 = vsel %vm1428, %v1310, %v1556
  %v1589 = vsel %vm1429, %v1315, %v1557
  %v1590 = vsel %vm1430, %v1320, %v1558
  %v1591 = vsel %vm1431, %v1325, %v1559
  %v1592 = vsel %vm1432, %v1330, %v1560
  %v1593 = vsel %vm1433, %v1335, %v1561
  %v1594 = vsel %vm1434, %v1340, %v1562
  %v1595 = vsel %vm1435, %v1345, %v1563
  %v1596 = vsel %vm1436, %v1350, %v1564
  %v1597 = vsel %vm1437, %v1355, %v1565
  %v1598 = vsel %vm1438, %v1360, %v1566
  %v1599 = vsel %vm1439, %v1365, %v1567
  %v1600 = vsel %vm1440, %v1370, %v1568
  %v1601 = vsel %vm1441, %v1375, %v1569
  %v1602 = vsel %vm1442, %v1380, %v1570
  %v1603 = vsel %vm1443, %v1385, %v1571
  %v1604 = vsel %vm1444, %v1390, %v1572
  %v1605 = vsel %vm1445, %v1395, %v1573
  %v1606 = vsel %vm1446, %v1400, %v1574
  %v1607 = vsel %vm1447, %v1405, %v1575
  %v1608 = vsel %vm1448, %v1410, %v1576
  %v1609 = vsel %vm1449, %v1415, %v1577
  %v1610 = vld [vmem:[%s1 + $0x60] sm:$0xff]
  %v1611 = vld [vmem:[%s1 + $0x68] sm:$0xff]
  %v1612 = vld [vmem:[%s1 + $0x70] sm:$0xff]
  %v1613 = vld [vmem:[%s1 + $0x78] sm:$0xff]
  %v1614 = vld [vmem:[%s1 + $0xa3] sm:$0x1]
  %v1615 = vlaneseq
  %v1616 = vshrl.u32 %v1615, 7
  %v1617 = vsub.s32 0, %v1616
  %v1618 = vrot.slane %v1614, %v1617
  %v1620 = vsel %vm52, %v1578, 0
  %v1623 = vsel %vm52, %v1579, 0
  %v1626 = vsel %vm52, %v1580, 0
  %v1629 = vsel %vm52, %v1581, 0
  %v1632 = vsel %vm52, %v1582, 0
  %v1635 = vsel %vm52, %v1583, 0
  %v1638 = vsel %vm52, %v1584, 0
  %v1641 = vsel %vm52, %v1585, 0
  %v1644 = vsel %vm52, %v1586, 0
  %v1647 = vsel %vm52, %v1587, 0
  %v1650 = vsel %vm52, %v1588, 0
  %v1653 = vsel %vm52, %v1589, 0
  %v1656 = vsel %vm52, %v1590, 0
  %v1659 = vsel %vm52, %v1591, 0
  %v1662 = vsel %vm52, %v1592, 0
  %v1665 = vsel %vm52, %v1593, 0
  %v1668 = vsel %vm52, %v1594, 0
  %v1671 = vsel %vm52, %v1595, 0
  %v1674 = vsel %vm52, %v1596, 0
  %v1677 = vsel %vm52, %v1597, 0
  %v1680 = vsel %vm52, %v1598, 0
  %v1683 = vsel %vm52, %v1599, 0
  %v1686 = vsel %vm52, %v1600, 0
  %v1689 = vsel %vm52, %v1601, 0
  %v1692 = vsel %vm52, %v1602, 0
  %v1695 = vsel %vm52, %v1603, 0
  %v1698 = vsel %vm52, %v1604, 0
  %v1701 = vsel %vm52, %v1605, 0
  %v1704 = vsel %vm52, %v1606, 0
  %v1707 = vsel %vm52, %v1607, 0
  %v1710 = vsel %vm52, %v1608, 0
  %v1713 = vsel %vm52, %v1609, 0
  %1715 = vmatprep.subr.mxu0 0.0
  %1716 = vmatpush1.msra.mxu0 %v1610
  %1717 = vmatprep.subr.mxu0 0.0
  %1718 = vmatpush1.msra.mxu0 %v1611
  %1719 = vmatprep.subr.mxu0 0.0
  %1720 = vmatpush1.msra.mxu0 %v1612
  %1721 = vmatprep.subr.mxu0 0.0
  %1722 = vmatpush1.msra.mxu0 %v1613
  %1723 = vmatprep.subr.mxu0 0.0
  %1724 = vmatpush1.msra.mxu0 0.0
  %1725 = vmatprep.subr.mxu0 0.0
  %1726 = vmatpush1.msra.mxu0 0.0
  %1727 = vmatprep.subr.mxu0 0.0
  %1728 = vmatpush1.msra.mxu0 0.0
  %1729 = vmatprep.subr.mxu0 0.0
  %1730 = vmatpush1.msra.mxu0 0.0
  %1731 = vmatprep.subr.mxu0 0.0
  %1732 = vmatpush1.msra.mxu0 0.0
  %1733 = vmatprep.subr.mxu0 0.0
  %1734 = vmatpush1.msra.mxu0 0.0
  %1735 = vmatprep.subr.mxu0 0.0
  %1736 = vmatpush1.msra.mxu0 0.0
  %1737 = vmatprep.subr.mxu0 0.0
  %1738 = vmatpush1.msra.mxu0 0.0
  %1739 = vmatprep.subr.mxu0 0.0
  %1740 = vmatpush1.msra.mxu0 0.0
  %1741 = vmatprep.subr.mxu0 0.0
  %1742 = vmatpush1.msra.mxu0 0.0
  %1743 = vmatprep.subr.mxu0 0.0
  %1744 = vmatpush1.msra.mxu0 0.0
  %1745 = vmatprep.subr.mxu0 0.0
  %1746 = vmatpush1.msra.mxu0 0.0
  %1747 = vmatprep.subr.mxu0 0.0
  %1748 = vmatpush1.msra.mxu0 0.0
  %1749 = vmatprep.subr.mxu0 0.0
  %1750 = vmatpush1.msra.mxu0 0.0
  %1751 = vmatprep.subr.mxu0 0.0
  %1752 = vmatpush1.msra.mxu0 0.0
  %1753 = vmatprep.subr.mxu0 0.0
  %1754 = vmatpush1.msra.mxu0 0.0
  %1755 = vmatprep.subr.mxu0 0.0
  %1756 = vmatpush1.msra.mxu0 0.0
  %1757 = vmatprep.subr.mxu0 0.0
  %1758 = vmatpush1.msra.mxu0 0.0
  %1759 = vmatprep.subr.mxu0 0.0
  %1760 = vmatpush1.msra.mxu0 0.0
  %1761 = vmatprep.subr.mxu0 0.0
  %1762 = vmatpush1.msra.mxu0 0.0
  %1763 = vmatprep.subr.mxu0 0.0
  %1764 = vmatpush1.msra.mxu0 0.0
  %1765 = vmatprep.subr.mxu0 0.0
  %1766 = vmatpush1.msra.mxu0 0.0
  %1767 = vmatprep.subr.mxu0 0.0
  %1768 = vmatpush1.msra.mxu0 0.0
  %1769 = vmatprep.subr.mxu0 0.0
  %1770 = vmatpush1.msra.mxu0 0.0
  %1771 = vmatprep.subr.mxu0 0.0
  %1772 = vmatpush1.msra.mxu0 0.0
  %1773 = vmatprep.subr.mxu0 0.0
  %1774 = vmatpush1.msra.mxu0 0.0
  %1775 = vmatprep.subr.mxu0 0.0
  %1776 = vmatpush1.msra.mxu0 0.0
  %1777 = vmatprep.subr.mxu0 0.0
  %1778 = vmatpush1.msra.mxu0 0.0
  %1779 = vmatprep.mubr.f32.mxu0 0.0
  %1780 = vmatmul.mubr.f32.gmra.mrb[0].mxu0 %v1620
  %v1781 = vpop.f32.mrb[0].mxu0
  %v1782 = vadd.f32 %v1618, %v1781
  %v1783 = vpop.f32.mrb[0].mxu0
  %1784 = vmatprep.mubr.f32.mxu0 0.0
  %1785 = vmatmul.mubr.f32.gmra.mrb[0].mxu0 %v1623
  %v1786 = vpop.f32.mrb[0].mxu0
  %v1787 = vadd.f32 %v1618, %v1786
  %v1788 = vpop.f32.mrb[0].mxu0
  %1789 = vmatprep.mubr.f32.mxu0 0.0
  %1790 = vmatmul.mubr.f32.gmra.mrb[0].mxu0 %v1626
  %v1791 = vpop.f32.mrb[0].mxu0
  %v1792 = vadd.f32 %v1618, %v1791
  %v1793 = vpop.f32.mrb[0].mxu0
  %1794 = vmatprep.mubr.f32.mxu0 0.0
  %1795 = vmatmul.mubr.f32.gmra.mrb[0].mxu0 %v1629
  %v1796 = vpop.f32.mrb[0].mxu0
  %v1797 = vadd.f32 %v1618, %v1796
  %v1798 = vpop.f32.mrb[0].mxu0
  %1799 = vmatprep.mubr.f32.mxu0 0.0
  %1800 = vmatmul.mubr.f32.gmra.mrb[0].mxu0 %v1632
  %v1801 = vpop.f32.mrb[0].mxu0
  %v1802 = vadd.f32 %v1618, %v1801
  %v1803 = vpop.f32.mrb[0].mxu0
  %1804 = vmatprep.mubr.f32.mxu0 0.0
  %1805 = vmatmul.mubr.f32.gmra.mrb[0].mxu0 %v1635
  %v1806 = vpop.f32.mrb[0].mxu0
  %v1807 = vadd.f32 %v1618, %v1806
  %v1808 = vpop.f32.mrb[0].mxu0
  %1809 = vmatprep.mubr.f32.mxu0 0.0
  %1810 = vmatmul.mubr.f32.gmra.mrb[0].mxu0 %v1638
  %v1811 = vpop.f32.mrb[0].mxu0
  %v1812 = vadd.f32 %v1618, %v1811
  %v1813 = vpop.f32.mrb[0].mxu0
  %1814 = vmatprep.mubr.f32.mxu0 0.0
  %1815 = vmatmul.mubr.f32.gmra.mrb[0].mxu0 %v1641
  %v1816 = vpop.f32.mrb[0].mxu0
  %v1817 = vadd.f32 %v1618, %v1816
  %v1818 = vpop.f32.mrb[0].mxu0
  %1819 = vmatprep.mubr.f32.mxu0 0.0
  %1820 = vmatmul.mubr.f32.gmra.mrb[0].mxu0 %v1644
  %v1821 = vpop.f32.mrb[0].mxu0
  %v1822 = vadd.f32 %v1618, %v1821
  %v1823 = vpop.f32.mrb[0].mxu0
  %1824 = vmatprep.mubr.f32.mxu0 0.0
  %1825 = vmatmul.mubr.f32.gmra.mrb[0].mxu0 %v1647
  %v1826 = vpop.f32.mrb[0].mxu0
  %v1827 = vadd.f32 %v1618, %v1826
  %v1828 = vpop.f32.mrb[0].mxu0
  %1829 = vmatprep.mubr.f32.mxu0 0.0
  %1830 = vmatmul.mubr.f32.gmra.mrb[0].mxu0 %v1650
  %v1831 = vpop.f32.mrb[0].mxu0
  %v1832 = vadd.f32 %v1618, %v1831
  %v1833 = vpop.f32.mrb[0].mxu0
  %1834 = vmatprep.mubr.f32.mxu0 0.0
  %1835 = vmatmul.mubr.f32.gmra.mrb[0].mxu0 %v1653
  %v1836 = vpop.f32.mrb[0].mxu0
  %v1837 = vadd.f32 %v1618, %v1836
  %v1838 = vpop.f32.mrb[0].mxu0
  %1839 = vmatprep.mubr.f32.mxu0 0.0
  %1840 = vmatmul.mubr.f32.gmra.mrb[0].mxu0 %v1656
  %v1841 = vpop.f32.mrb[0].mxu0
  %v1842 = vadd.f32 %v1618, %v1841
  %v1843 = vpop.f32.mrb[0].mxu0
  %1844 = vmatprep.mubr.f32.mxu0 0.0
  %1845 = vmatmul.mubr.f32.gmra.mrb[0].mxu0 %v1659
  %v1846 = vpop.f32.mrb[0].mxu0
  %v1847 = vadd.f32 %v1618, %v1846
  %v1848 = vpop.f32.mrb[0].mxu0
  %1849 = vmatprep.mubr.f32.mxu0 0.0
  %1850 = vmatmul.mubr.f32.gmra.mrb[0].mxu0 %v1662
  %v1851 = vpop.f32.mrb[0].mxu0
  %v1852 = vadd.f32 %v1618, %v1851
  %v1853 = vpop.f32.mrb[0].mxu0
  %1854 = vmatprep.mubr.f32.mxu0 0.0
  %1855 = vmatmul.mubr.f32.gmra.mrb[0].mxu0 %v1665
  %v1856 = vpop.f32.mrb[0].mxu0
  %v1857 = vadd.f32 %v1618, %v1856
  %v1858 = vpop.f32.mrb[0].mxu0
  %1859 = vmatprep.mubr.f32.mxu0 0.0
  %1860 = vmatmul.mubr.f32.gmra.mrb[0].mxu0 %v1668
  %v1861 = vpop.f32.mrb[0].mxu0
  %v1862 = vadd.f32 %v1618, %v1861
  %v1863 = vpop.f32.mrb[0].mxu0
  %1864 = vmatprep.mubr.f32.mxu0 0.0
  %1865 = vmatmul.mubr.f32.gmra.mrb[0].mxu0 %v1671
  %v1866 = vpop.f32.mrb[0].mxu0
  %v1867 = vadd.f32 %v1618, %v1866
  %v1868 = vpop.f32.mrb[0].mxu0
  %1869 = vmatprep.mubr.f32.mxu0 0.0
  %1870 = vmatmul.mubr.f32.gmra.mrb[0].mxu0 %v1674
  %v1871 = vpop.f32.mrb[0].mxu0
  %v1872 = vadd.f32 %v1618, %v1871
  %v1873 = vpop.f32.mrb[0].mxu0
  %1874 = vmatprep.mubr.f32.mxu0 0.0
  %1875 = vmatmul.mubr.f32.gmra.mrb[0].mxu0 %v1677
  %v1876 = vpop.f32.mrb[0].mxu0
  %v1877 = vadd.f32 %v1618, %v1876
  %v1878 = vpop.f32.mrb[0].mxu0
  %1879 = vmatprep.mubr.f32.mxu0 0.0
  %1880 = vmatmul.mubr.f32.gmra.mrb[0].mxu0 %v1680
  %v1881 = vpop.f32.mrb[0].mxu0
  %v1882 = vadd.f32 %v1618, %v1881
  %v1883 = vpop.f32.mrb[0].mxu0
  %1884 = vmatprep.mubr.f32.mxu0 0.0
  %1885 = vmatmul.mubr.f32.gmra.mrb[0].mxu0 %v1683
  %v1886 = vpop.f32.mrb[0].mxu0
  %v1887 = vadd.f32 %v1618, %v1886
  %v1888 = vpop.f32.mrb[0].mxu0
  %1889 = vmatprep.mubr.f32.mxu0 0.0
  %1890 = vmatmul.mubr.f32.gmra.mrb[0].mxu0 %v1686
  %v1891 = vpop.f32.mrb[0].mxu0
  %v1892 = vadd.f32 %v1618, %v1891
  %v1893 = vpop.f32.mrb[0].mxu0
  %1894 = vmatprep.mubr.f32.mxu0 0.0
  %1895 = vmatmul.mubr.f32.gmra.mrb[0].mxu0 %v1689
  %v1896 = vpop.f32.mrb[0].mxu0
  %v1897 = vadd.f32 %v1618, %v1896
  %v1898 = vpop.f32.mrb[0].mxu0
  %1899 = vmatprep.mubr.f32.mxu0 0.0
  %1900 = vmatmul.mubr.f32.gmra.mrb[0].mxu0 %v1692
  %v1901 = vpop.f32.mrb[0].mxu0
  %v1902 = vadd.f32 %v1618, %v1901
  %v1903 = vpop.f32.mrb[0].mxu0
  %1904 = vmatprep.mubr.f32.mxu0 0.0
  %1905 = vmatmul.mubr.f32.gmra.mrb[0].mxu0 %v1695
  %v1906 = vpop.f32.mrb[0].mxu0
  %v1907 = vadd.f32 %v1618, %v1906
  %v1908 = vpop.f32.mrb[0].mxu0
  %1909 = vmatprep.mubr.f32.mxu0 0.0
  %1910 = vmatmul.mubr.f32.gmra.mrb[0].mxu0 %v1698
  %v1911 = vpop.f32.mrb[0].mxu0
  %v1912 = vadd.f32 %v1618, %v1911
  %v1913 = vpop.f32.mrb[0].mxu0
  %1914 = vmatprep.mubr.f32.mxu0 0.0
  %1915 = vmatmul.mubr.f32.gmra.mrb[0].mxu0 %v1701
  %v1916 = vpop.f32.mrb[0].mxu0
  %v1917 = vadd.f32 %v1618, %v1916
  %v1918 = vpop.f32.mrb[0].mxu0
  %1919 = vmatprep.mubr.f32.mxu0 0.0
  %1920 = vmatmul.mubr.f32.gmra.mrb[0].mxu0 %v1704
  %v1921 = vpop.f32.mrb[0].mxu0
  %v1922 = vadd.f32 %v1618, %v1921
  %v1923 = vpop.f32.mrb[0].mxu0
  %1924 = vmatprep.mubr.f32.mxu0 0.0
  %1925 = vmatmul.mubr.f32.gmra.mrb[0].mxu0 %v1707
  %v1926 = vpop.f32.mrb[0].mxu0
  %v1927 = vadd.f32 %v1618, %v1926
  %v1928 = vpop.f32.mrb[0].mxu0
  %1929 = vmatprep.mubr.f32.mxu0 0.0
  %1930 = vmatmul.mubr.f32.gmra.mrb[0].mxu0 %v1710
  %v1931 = vpop.f32.mrb[0].mxu0
  %v1932 = vadd.f32 %v1618, %v1931
  %v1933 = vpop.f32.mrb[0].mxu0
  %1934 = vmatprep.mubr.f32.mxu0 0.0
  %1935 = vmatmul.mubr.f32.gmra.mrb[0].mxu0 %v1713
  %v1936 = vpop.f32.mrb[0].mxu0
  %v1937 = vadd.f32 %v1618, %v1936
  %v1938 = vpop.f32.mrb[0].mxu0
  %1939 = vdwg.mxu0
  %vm1940 = vcmp.gt.f32.partialorder %v1782, 0.0
  %vm1941 = vcmp.gt.f32.partialorder %v1787, 0.0
  %vm1942 = vcmp.gt.f32.partialorder %v1792, 0.0
  %vm1943 = vcmp.gt.f32.partialorder %v1797, 0.0
  %vm1944 = vcmp.gt.f32.partialorder %v1802, 0.0
  %vm1945 = vcmp.gt.f32.partialorder %v1807, 0.0
  %vm1946 = vcmp.gt.f32.partialorder %v1812, 0.0
  %vm1947 = vcmp.gt.f32.partialorder %v1817, 0.0
  %vm1948 = vcmp.gt.f32.partialorder %v1822, 0.0
  %vm1949 = vcmp.gt.f32.partialorder %v1827, 0.0
  %vm1950 = vcmp.gt.f32.partialorder %v1832, 0.0
  %vm1951 = vcmp.gt.f32.partialorder %v1837, 0.0
  %vm1952 = vcmp.gt.f32.partialorder %v1842, 0.0
  %vm1953 = vcmp.gt.f32.partialorder %v1847, 0.0
  %vm1954 = vcmp.gt.f32.partialorder %v1852, 0.0
  %vm1955 = vcmp.gt.f32.partialorder %v1857, 0.0
  %vm1956 = vcmp.gt.f32.partialorder %v1862, 0.0
  %vm1957 = vcmp.gt.f32.partialorder %v1867, 0.0
  %vm1958 = vcmp.gt.f32.partialorder %v1872, 0.0
  %vm1959 = vcmp.gt.f32.partialorder %v1877, 0.0
  %vm1960 = vcmp.gt.f32.partialorder %v1882, 0.0
  %vm1961 = vcmp.gt.f32.partialorder %v1887, 0.0
  %vm1962 = vcmp.gt.f32.partialorder %v1892, 0.0
  %vm1963 = vcmp.gt.f32.partialorder %v1897, 0.0
  %vm1964 = vcmp.gt.f32.partialorder %v1902, 0.0
  %vm1965 = vcmp.gt.f32.partialorder %v1907, 0.0
  %vm1966 = vcmp.gt.f32.partialorder %v1912, 0.0
  %vm1967 = vcmp.gt.f32.partialorder %v1917, 0.0
  %vm1968 = vcmp.gt.f32.partialorder %v1922, 0.0
  %vm1969 = vcmp.gt.f32.partialorder %v1927, 0.0
  %vm1970 = vcmp.gt.f32.partialorder %v1932, 0.0
  %vm1971 = vcmp.gt.f32.partialorder %v1937, 0.0
  %v1972 = vmin.f32 %v1782, 0.0
  %v1973 = vmin.f32 %v1787, 0.0
  %v1974 = vmin.f32 %v1792, 0.0
  %v1975 = vmin.f32 %v1797, 0.0
  %v1976 = vmin.f32 %v1802, 0.0
  %v1977 = vmin.f32 %v1807, 0.0
  %v1978 = vmin.f32 %v1812, 0.0
  %v1979 = vmin.f32 %v1817, 0.0
  %v1980 = vmin.f32 %v1822, 0.0
  %v1981 = vmin.f32 %v1827, 0.0
  %v1982 = vmin.f32 %v1832, 0.0
  %v1983 = vmin.f32 %v1837, 0.0
  %v1984 = vmin.f32 %v1842, 0.0
  %v1985 = vmin.f32 %v1847, 0.0
  %v1986 = vmin.f32 %v1852, 0.0
  %v1987 = vmin.f32 %v1857, 0.0
  %v1988 = vmin.f32 %v1862, 0.0
  %v1989 = vmin.f32 %v1867, 0.0
  %v1990 = vmin.f32 %v1872, 0.0
  %v1991 = vmin.f32 %v1877, 0.0
  %v1992 = vmin.f32 %v1882, 0.0
  %v1993 = vmin.f32 %v1887, 0.0
  %v1994 = vmin.f32 %v1892, 0.0
  %v1995 = vmin.f32 %v1897, 0.0
  %v1996 = vmin.f32 %v1902, 0.0
  %v1997 = vmin.f32 %v1907, 0.0
  %v1998 = vmin.f32 %v1912, 0.0
  %v1999 = vmin.f32 %v1917, 0.0
  %v2000 = vmin.f32 %v1922, 0.0
  %v2001 = vmin.f32 %v1927, 0.0
  %v2002 = vmin.f32 %v1932, 0.0
  %v2003 = vmin.f32 %v1937, 0.0
  %v2004 = vmul.f32 %v1972, 1.442695
  %v2005 = vpow.pop %v2004
  %v2006 = vmul.f32 %v1973, 1.442695
  %v2007 = vpow.pop %v2006
  %v2008 = vmul.f32 %v1974, 1.442695
  %v2009 = vpow.pop %v2008
  %v2010 = vmul.f32 %v1975, 1.442695
  %v2011 = vpow.pop %v2010
  %v2012 = vmul.f32 %v1976, 1.442695
  %v2013 = vpow.pop %v2012
  %v2014 = vmul.f32 %v1977, 1.442695
  %v2015 = vpow.pop %v2014
  %v2016 = vmul.f32 %v1978, 1.442695
  %v2017 = vpow.pop %v2016
  %v2018 = vmul.f32 %v1979, 1.442695
  %v2019 = vpow.pop %v2018
  %v2020 = vmul.f32 %v1980, 1.442695
  %v2021 = vpow.pop %v2020
  %v2022 = vmul.f32 %v1981, 1.442695
  %v2023 = vpow.pop %v2022
  %v2024 = vmul.f32 %v1982, 1.442695
  %v2025 = vpow.pop %v2024
  %v2026 = vmul.f32 %v1983, 1.442695
  %v2027 = vpow.pop %v2026
  %v2028 = vmul.f32 %v1984, 1.442695
  %v2029 = vpow.pop %v2028
  %v2030 = vmul.f32 %v1985, 1.442695
  %v2031 = vpow.pop %v2030
  %v2032 = vmul.f32 %v1986, 1.442695
  %v2033 = vpow.pop %v2032
  %v2034 = vmul.f32 %v1987, 1.442695
  %v2035 = vpow.pop %v2034
  %v2036 = vmul.f32 %v1988, 1.442695
  %v2037 = vpow.pop %v2036
  %v2038 = vmul.f32 %v1989, 1.442695
  %v2039 = vpow.pop %v2038
  %v2040 = vmul.f32 %v1990, 1.442695
  %v2041 = vpow.pop %v2040
  %v2042 = vmul.f32 %v1991, 1.442695
  %v2043 = vpow.pop %v2042
  %v2044 = vmul.f32 %v1992, 1.442695
  %v2045 = vpow.pop %v2044
  %v2046 = vmul.f32 %v1993, 1.442695
  %v2047 = vpow.pop %v2046
  %v2048 = vmul.f32 %v1994, 1.442695
  %v2049 = vpow.pop %v2048
  %v2050 = vmul.f32 %v1995, 1.442695
  %v2051 = vpow.pop %v2050
  %v2052 = vmul.f32 %v1996, 1.442695
  %v2053 = vpow.pop %v2052
  %v2054 = vmul.f32 %v1997, 1.442695
  %v2055 = vpow.pop %v2054
  %v2056 = vmul.f32 %v1998, 1.442695
  %v2057 = vpow.pop %v2056
  %v2058 = vmul.f32 %v1999, 1.442695
  %v2059 = vpow.pop %v2058
  %v2060 = vmul.f32 %v2000, 1.442695
  %v2061 = vpow.pop %v2060
  %v2062 = vmul.f32 %v2001, 1.442695
  %v2063 = vpow.pop %v2062
  %v2064 = vmul.f32 %v2002, 1.442695
  %v2065 = vpow.pop %v2064
  %v2066 = vmul.f32 %v2003, 1.442695
  %v2067 = vpow.pop %v2066
  %v2068 = vsub.f32 %v2005, 1.0
  %v2069 = vsub.f32 %v2007, 1.0
  %v2070 = vsub.f32 %v2009, 1.0
  %v2071 = vsub.f32 %v2011, 1.0
  %v2072 = vsub.f32 %v2013, 1.0
  %v2073 = vsub.f32 %v2015, 1.0
  %v2074 = vsub.f32 %v2017, 1.0
  %v2075 = vsub.f32 %v2019, 1.0
  %v2076 = vsub.f32 %v2021, 1.0
  %v2077 = vsub.f32 %v2023, 1.0
  %v2078 = vsub.f32 %v2025, 1.0
  %v2079 = vsub.f32 %v2027, 1.0
  %v2080 = vsub.f32 %v2029, 1.0
  %v2081 = vsub.f32 %v2031, 1.0
  %v2082 = vsub.f32 %v2033, 1.0
  %v2083 = vsub.f32 %v2035, 1.0
  %v2084 = vsub.f32 %v2037, 1.0
  %v2085 = vsub.f32 %v2039, 1.0
  %v2086 = vsub.f32 %v2041, 1.0
  %v2087 = vsub.f32 %v2043, 1.0
  %v2088 = vsub.f32 %v2045, 1.0
  %v2089 = vsub.f32 %v2047, 1.0
  %v2090 = vsub.f32 %v2049, 1.0
  %v2091 = vsub.f32 %v2051, 1.0
  %v2092 = vsub.f32 %v2053, 1.0
  %v2093 = vsub.f32 %v2055, 1.0
  %v2094 = vsub.f32 %v2057, 1.0
  %v2095 = vsub.f32 %v2059, 1.0
  %v2096 = vsub.f32 %v2061, 1.0
  %v2097 = vsub.f32 %v2063, 1.0
  %v2098 = vsub.f32 %v2065, 1.0
  %v2099 = vsub.f32 %v2067, 1.0
  %v2100 = vsel %vm1940, %v1782, %v2068
  %v2101 = vsel %vm1941, %v1787, %v2069
  %v2102 = vsel %vm1942, %v1792, %v2070
  %v2103 = vsel %vm1943, %v1797, %v2071
  %v2104 = vsel %vm1944, %v1802, %v2072
  %v2105 = vsel %vm1945, %v1807, %v2073
  %v2106 = vsel %vm1946, %v1812, %v2074
  %v2107 = vsel %vm1947, %v1817, %v2075
  %v2108 = vsel %vm1948, %v1822, %v2076
  %v2109 = vsel %vm1949, %v1827, %v2077
  %v2110 = vsel %vm1950, %v1832, %v2078
  %v2111 = vsel %vm1951, %v1837, %v2079
  %v2112 = vsel %vm1952, %v1842, %v2080
  %v2113 = vsel %vm1953, %v1847, %v2081
  %v2114 = vsel %vm1954, %v1852, %v2082
  %v2115 = vsel %vm1955, %v1857, %v2083
  %v2116 = vsel %vm1956, %v1862, %v2084
  %v2117 = vsel %vm1957, %v1867, %v2085
  %v2118 = vsel %vm1958, %v1872, %v2086
  %v2119 = vsel %vm1959, %v1877, %v2087
  %v2120 = vsel %vm1960, %v1882, %v2088
  %v2121 = vsel %vm1961, %v1887, %v2089
  %v2122 = vsel %vm1962, %v1892, %v2090
  %v2123 = vsel %vm1963, %v1897, %v2091
  %v2124 = vsel %vm1964, %v1902, %v2092
  %v2125 = vsel %vm1965, %v1907, %v2093
  %v2126 = vsel %vm1966, %v1912, %v2094
  %v2127 = vsel %vm1967, %v1917, %v2095
  %v2128 = vsel %vm1968, %v1922, %v2096
  %v2129 = vsel %vm1969, %v1927, %v2097
  %v2130 = vsel %vm1970, %v1932, %v2098
  %v2131 = vsel %vm1971, %v1937, %v2099
  %v2132 = vld [vmem:[%s1 + $0x80] sm:$0xff]
  %v2133 = vld [vmem:[%s1 + $0x88] sm:$0xff]
  %v2134 = vld [vmem:[%s1 + $0x90] sm:$0xff]
  %v2135 = vld [vmem:[%s1 + $0x98] sm:$0xff]
  %v2136 = vld [vmem:[%s1 + $0xa4] sm:$0x1]
  %v2137 = vlaneseq
  %v2138 = vshrl.u32 %v2137, 7
  %v2139 = vsub.s32 0, %v2138
  %v2140 = vrot.slane %v2136, %v2139
  %v2142 = vsel %vm52, %v2100, 0
  %v2145 = vsel %vm52, %v2101, 0
  %v2148 = vsel %vm52, %v2102, 0
  %v2151 = vsel %vm52, %v2103, 0
  %v2154 = vsel %vm52, %v2104, 0
  %v2157 = vsel %vm52, %v2105, 0
  %v2160 = vsel %vm52, %v2106, 0
  %v2163 = vsel %vm52, %v2107, 0
  %v2166 = vsel %vm52, %v2108, 0
  %v2169 = vsel %vm52, %v2109, 0
  %v2172 = vsel %vm52, %v2110, 0
  %v2175 = vsel %vm52, %v2111, 0
  %v2178 = vsel %vm52, %v2112, 0
  %v2181 = vsel %vm52, %v2113, 0
  %v2184 = vsel %vm52, %v2114, 0
  %v2187 = vsel %vm52, %v2115, 0
  %v2190 = vsel %vm52, %v2116, 0
  %v2193 = vsel %vm52, %v2117, 0
  %v2196 = vsel %vm52, %v2118, 0
  %v2199 = vsel %vm52, %v2119, 0
  %v2202 = vsel %vm52, %v2120, 0
  %v2205 = vsel %vm52, %v2121, 0
  %v2208 = vsel %vm52, %v2122, 0
  %v2211 = vsel %vm52, %v2123, 0
  %v2214 = vsel %vm52, %v2124, 0
  %v2217 = vsel %vm52, %v2125, 0
  %v2220 = vsel %vm52, %v2126, 0
  %v2223 = vsel %vm52, %v2127, 0
  %v2226 = vsel %vm52, %v2128, 0
  %v2229 = vsel %vm52, %v2129, 0
  %v2232 = vsel %vm52, %v2130, 0
  %v2235 = vsel %vm52, %v2131, 0
  %2237 = vmatprep.subr.mxu0 0.0
  %2238 = vmatpush1.msra.mxu0 %v2132
  %2239 = vmatprep.subr.mxu0 0.0
  %2240 = vmatpush1.msra.mxu0 %v2133
  %2241 = vmatprep.subr.mxu0 0.0
  %2242 = vmatpush1.msra.mxu0 %v2134
  %2243 = vmatprep.subr.mxu0 0.0
  %2244 = vmatpush1.msra.mxu0 %v2135
  %2245 = vmatprep.subr.mxu0 0.0
  %2246 = vmatpush1.msra.mxu0 0.0
  %2247 = vmatprep.subr.mxu0 0.0
  %2248 = vmatpush1.msra.mxu0 0.0
  %2249 = vmatprep.subr.mxu0 0.0
  %2250 = vmatpush1.msra.mxu0 0.0
  %2251 = vmatprep.subr.mxu0 0.0
  %2252 = vmatpush1.msra.mxu0 0.0
  %2253 = vmatprep.subr.mxu0 0.0
  %2254 = vmatpush1.msra.mxu0 0.0
  %2255 = vmatprep.subr.mxu0 0.0
  %2256 = vmatpush1.msra.mxu0 0.0
  %2257 = vmatprep.subr.mxu0 0.0
  %2258 = vmatpush1.msra.mxu0 0.0
  %2259 = vmatprep.subr.mxu0 0.0
  %2260 = vmatpush1.msra.mxu0 0.0
  %2261 = vmatprep.subr.mxu0 0.0
  %2262 = vmatpush1.msra.mxu0 0.0
  %2263 = vmatprep.subr.mxu0 0.0
  %2264 = vmatpush1.msra.mxu0 0.0
  %2265 = vmatprep.subr.mxu0 0.0
  %2266 = vmatpush1.msra.mxu0 0.0
  %2267 = vmatprep.subr.mxu0 0.0
  %2268 = vmatpush1.msra.mxu0 0.0
  %2269 = vmatprep.subr.mxu0 0.0
  %2270 = vmatpush1.msra.mxu0 0.0
  %2271 = vmatprep.subr.mxu0 0.0
  %2272 = vmatpush1.msra.mxu0 0.0
  %2273 = vmatprep.subr.mxu0 0.0
  %2274 = vmatpush1.msra.mxu0 0.0
  %2275 = vmatprep.subr.mxu0 0.0
  %2276 = vmatpush1.msra.mxu0 0.0
  %2277 = vmatprep.subr.mxu0 0.0
  %2278 = vmatpush1.msra.mxu0 0.0
  %2279 = vmatprep.subr.mxu0 0.0
  %2280 = vmatpush1.msra.mxu0 0.0
  %2281 = vmatprep.subr.mxu0 0.0
  %2282 = vmatpush1.msra.mxu0 0.0
  %2283 = vmatprep.subr.mxu0 0.0
  %2284 = vmatpush1.msra.mxu0 0.0
  %2285 = vmatprep.subr.mxu0 0.0
  %2286 = vmatpush1.msra.mxu0 0.0
  %2287 = vmatprep.subr.mxu0 0.0
  %2288 = vmatpush1.msra.mxu0 0.0
  %2289 = vmatprep.subr.mxu0 0.0
  %2290 = vmatpush1.msra.mxu0 0.0
  %2291 = vmatprep.subr.mxu0 0.0
  %2292 = vmatpush1.msra.mxu0 0.0
  %2293 = vmatprep.subr.mxu0 0.0
  %2294 = vmatpush1.msra.mxu0 0.0
  %2295 = vmatprep.subr.mxu0 0.0
  %2296 = vmatpush1.msra.mxu0 0.0
  %2297 = vmatprep.subr.mxu0 0.0
  %2298 = vmatpush1.msra.mxu0 0.0
  %2299 = vmatprep.subr.mxu0 0.0
  %2300 = vmatpush1.msra.mxu0 0.0
  %2301 = vmatprep.mubr.f32.mxu0 0.0
  %2302 = vmatmul.mubr.f32.gmra.mrb[0].mxu0 %v2142
  %v2303 = vpop.f32.mrb[0].mxu0
  %v2304 = vadd.f32 %v2140, %v2303
  %v2305 = vpop.f32.mrb[0].mxu0
  %2306 = vmatprep.mubr.f32.mxu0 0.0
  %2307 = vmatmul.mubr.f32.gmra.mrb[0].mxu0 %v2145
  %v2308 = vpop.f32.mrb[0].mxu0
  %v2309 = vadd.f32 %v2140, %v2308
  %v2310 = vpop.f32.mrb[0].mxu0
  %2311 = vmatprep.mubr.f32.mxu0 0.0
  %2312 = vmatmul.mubr.f32.gmra.mrb[0].mxu0 %v2148
  %v2313 = vpop.f32.mrb[0].mxu0
  %v2314 = vadd.f32 %v2140, %v2313
  %v2315 = vpop.f32.mrb[0].mxu0
  %2316 = vmatprep.mubr.f32.mxu0 0.0
  %2317 = vmatmul.mubr.f32.gmra.mrb[0].mxu0 %v2151
  %v2318 = vpop.f32.mrb[0].mxu0
  %v2319 = vadd.f32 %v2140, %v2318
  %v2320 = vpop.f32.mrb[0].mxu0
  %2321 = vmatprep.mubr.f32.mxu0 0.0
  %2322 = vmatmul.mubr.f32.gmra.mrb[0].mxu0 %v2154
  %v2323 = vpop.f32.mrb[0].mxu0
  %v2324 = vadd.f32 %v2140, %v2323
  %v2325 = vpop.f32.mrb[0].mxu0
  %2326 = vmatprep.mubr.f32.mxu0 0.0
  %2327 = vmatmul.mubr.f32.gmra.mrb[0].mxu0 %v2157
  %v2328 = vpop.f32.mrb[0].mxu0
  %v2329 = vadd.f32 %v2140, %v2328
  %v2330 = vpop.f32.mrb[0].mxu0
  %2331 = vmatprep.mubr.f32.mxu0 0.0
  %2332 = vmatmul.mubr.f32.gmra.mrb[0].mxu0 %v2160
  %v2333 = vpop.f32.mrb[0].mxu0
  %v2334 = vadd.f32 %v2140, %v2333
  %v2335 = vpop.f32.mrb[0].mxu0
  %2336 = vmatprep.mubr.f32.mxu0 0.0
  %2337 = vmatmul.mubr.f32.gmra.mrb[0].mxu0 %v2163
  %v2338 = vpop.f32.mrb[0].mxu0
  %v2339 = vadd.f32 %v2140, %v2338
  %v2340 = vpop.f32.mrb[0].mxu0
  %2341 = vmatprep.mubr.f32.mxu0 0.0
  %2342 = vmatmul.mubr.f32.gmra.mrb[0].mxu0 %v2166
  %v2343 = vpop.f32.mrb[0].mxu0
  %v2344 = vadd.f32 %v2140, %v2343
  %v2345 = vpop.f32.mrb[0].mxu0
  %2346 = vmatprep.mubr.f32.mxu0 0.0
  %2347 = vmatmul.mubr.f32.gmra.mrb[0].mxu0 %v2169
  %v2348 = vpop.f32.mrb[0].mxu0
  %v2349 = vadd.f32 %v2140, %v2348
  %v2350 = vpop.f32.mrb[0].mxu0
  %2351 = vmatprep.mubr.f32.mxu0 0.0
  %2352 = vmatmul.mubr.f32.gmra.mrb[0].mxu0 %v2172
  %v2353 = vpop.f32.mrb[0].mxu0
  %v2354 = vadd.f32 %v2140, %v2353
  %v2355 = vpop.f32.mrb[0].mxu0
  %2356 = vmatprep.mubr.f32.mxu0 0.0
  %2357 = vmatmul.mubr.f32.gmra.mrb[0].mxu0 %v2175
  %v2358 = vpop.f32.mrb[0].mxu0
  %v2359 = vadd.f32 %v2140, %v2358
  %v2360 = vpop.f32.mrb[0].mxu0
  %2361 = vmatprep.mubr.f32.mxu0 0.0
  %2362 = vmatmul.mubr.f32.gmra.mrb[0].mxu0 %v2178
  %v2363 = vpop.f32.mrb[0].mxu0
  %v2364 = vadd.f32 %v2140, %v2363
  %v2365 = vpop.f32.mrb[0].mxu0
  %2366 = vmatprep.mubr.f32.mxu0 0.0
  %2367 = vmatmul.mubr.f32.gmra.mrb[0].mxu0 %v2181
  %v2368 = vpop.f32.mrb[0].mxu0
  %v2369 = vadd.f32 %v2140, %v2368
  %v2370 = vpop.f32.mrb[0].mxu0
  %2371 = vmatprep.mubr.f32.mxu0 0.0
  %2372 = vmatmul.mubr.f32.gmra.mrb[0].mxu0 %v2184
  %v2373 = vpop.f32.mrb[0].mxu0
  %v2374 = vadd.f32 %v2140, %v2373
  %v2375 = vpop.f32.mrb[0].mxu0
  %2376 = vmatprep.mubr.f32.mxu0 0.0
  %2377 = vmatmul.mubr.f32.gmra.mrb[0].mxu0 %v2187
  %v2378 = vpop.f32.mrb[0].mxu0
  %v2379 = vadd.f32 %v2140, %v2378
  %v2380 = vpop.f32.mrb[0].mxu0
  %2381 = vmatprep.mubr.f32.mxu0 0.0
  %2382 = vmatmul.mubr.f32.gmra.mrb[0].mxu0 %v2190
  %v2383 = vpop.f32.mrb[0].mxu0
  %v2384 = vadd.f32 %v2140, %v2383
  %v2385 = vpop.f32.mrb[0].mxu0
  %2386 = vmatprep.mubr.f32.mxu0 0.0
  %2387 = vmatmul.mubr.f32.gmra.mrb[0].mxu0 %v2193
  %v2388 = vpop.f32.mrb[0].mxu0
  %v2389 = vadd.f32 %v2140, %v2388
  %v2390 = vpop.f32.mrb[0].mxu0
  %2391 = vmatprep.mubr.f32.mxu0 0.0
  %2392 = vmatmul.mubr.f32.gmra.mrb[0].mxu0 %v2196
  %v2393 = vpop.f32.mrb[0].mxu0
  %v2394 = vadd.f32 %v2140, %v2393
  %v2395 = vpop.f32.mrb[0].mxu0
  %2396 = vmatprep.mubr.f32.mxu0 0.0
  %2397 = vmatmul.mubr.f32.gmra.mrb[0].mxu0 %v2199
  %v2398 = vpop.f32.mrb[0].mxu0
  %v2399 = vadd.f32 %v2140, %v2398
  %v2400 = vpop.f32.mrb[0].mxu0
  %2401 = vmatprep.mubr.f32.mxu0 0.0
  %2402 = vmatmul.mubr.f32.gmra.mrb[0].mxu0 %v2202
  %v2403 = vpop.f32.mrb[0].mxu0
  %v2404 = vadd.f32 %v2140, %v2403
  %v2405 = vpop.f32.mrb[0].mxu0
  %2406 = vmatprep.mubr.f32.mxu0 0.0
  %2407 = vmatmul.mubr.f32.gmra.mrb[0].mxu0 %v2205
  %v2408 = vpop.f32.mrb[0].mxu0
  %v2409 = vadd.f32 %v2140, %v2408
  %v2410 = vpop.f32.mrb[0].mxu0
  %2411 = vmatprep.mubr.f32.mxu0 0.0
  %2412 = vmatmul.mubr.f32.gmra.mrb[0].mxu0 %v2208
  %v2413 = vpop.f32.mrb[0].mxu0
  %v2414 = vadd.f32 %v2140, %v2413
  %v2415 = vpop.f32.mrb[0].mxu0
  %2416 = vmatprep.mubr.f32.mxu0 0.0
  %2417 = vmatmul.mubr.f32.gmra.mrb[0].mxu0 %v2211
  %v2418 = vpop.f32.mrb[0].mxu0
  %v2419 = vadd.f32 %v2140, %v2418
  %v2420 = vpop.f32.mrb[0].mxu0
  %2421 = vmatprep.mubr.f32.mxu0 0.0
  %2422 = vmatmul.mubr.f32.gmra.mrb[0].mxu0 %v2214
  %v2423 = vpop.f32.mrb[0].mxu0
  %v2424 = vadd.f32 %v2140, %v2423
  %v2425 = vpop.f32.mrb[0].mxu0
  %2426 = vmatprep.mubr.f32.mxu0 0.0
  %2427 = vmatmul.mubr.f32.gmra.mrb[0].mxu0 %v2217
  %v2428 = vpop.f32.mrb[0].mxu0
  %v2429 = vadd.f32 %v2140, %v2428
  %v2430 = vpop.f32.mrb[0].mxu0
  %2431 = vmatprep.mubr.f32.mxu0 0.0
  %2432 = vmatmul.mubr.f32.gmra.mrb[0].mxu0 %v2220
  %v2433 = vpop.f32.mrb[0].mxu0
  %v2434 = vadd.f32 %v2140, %v2433
  %v2435 = vpop.f32.mrb[0].mxu0
  %2436 = vmatprep.mubr.f32.mxu0 0.0
  %2437 = vmatmul.mubr.f32.gmra.mrb[0].mxu0 %v2223
  %v2438 = vpop.f32.mrb[0].mxu0
  %v2439 = vadd.f32 %v2140, %v2438
  %v2440 = vpop.f32.mrb[0].mxu0
  %2441 = vmatprep.mubr.f32.mxu0 0.0
  %2442 = vmatmul.mubr.f32.gmra.mrb[0].mxu0 %v2226
  %v2443 = vpop.f32.mrb[0].mxu0
  %v2444 = vadd.f32 %v2140, %v2443
  %v2445 = vpop.f32.mrb[0].mxu0
  %2446 = vmatprep.mubr.f32.mxu0 0.0
  %2447 = vmatmul.mubr.f32.gmra.mrb[0].mxu0 %v2229
  %v2448 = vpop.f32.mrb[0].mxu0
  %v2449 = vadd.f32 %v2140, %v2448
  %v2450 = vpop.f32.mrb[0].mxu0
  %2451 = vmatprep.mubr.f32.mxu0 0.0
  %2452 = vmatmul.mubr.f32.gmra.mrb[0].mxu0 %v2232
  %v2453 = vpop.f32.mrb[0].mxu0
  %v2454 = vadd.f32 %v2140, %v2453
  %v2455 = vpop.f32.mrb[0].mxu0
  %2456 = vmatprep.mubr.f32.mxu0 0.0
  %2457 = vmatmul.mubr.f32.gmra.mrb[0].mxu0 %v2235
  %v2458 = vpop.f32.mrb[0].mxu0
  %v2459 = vadd.f32 %v2140, %v2458
  %v2460 = vpop.f32.mrb[0].mxu0
  %2461 = vdwg.mxu0
  %v2462 = vtanh.pop %v2304
  %v2463 = vtanh.pop %v2309
  %v2464 = vtanh.pop %v2314
  %v2465 = vtanh.pop %v2319
  %v2466 = vtanh.pop %v2324
  %v2467 = vtanh.pop %v2329
  %v2468 = vtanh.pop %v2334
  %v2469 = vtanh.pop %v2339
  %v2470 = vtanh.pop %v2344
  %v2471 = vtanh.pop %v2349
  %v2472 = vtanh.pop %v2354
  %v2473 = vtanh.pop %v2359
  %v2474 = vtanh.pop %v2364
  %v2475 = vtanh.pop %v2369
  %v2476 = vtanh.pop %v2374
  %v2477 = vtanh.pop %v2379
  %v2478 = vtanh.pop %v2384
  %v2479 = vtanh.pop %v2389
  %v2480 = vtanh.pop %v2394
  %v2481 = vtanh.pop %v2399
  %v2482 = vtanh.pop %v2404
  %v2483 = vtanh.pop %v2409
  %v2484 = vtanh.pop %v2414
  %v2485 = vtanh.pop %v2419
  %v2486 = vtanh.pop %v2424
  %v2487 = vtanh.pop %v2429
  %v2488 = vtanh.pop %v2434
  %v2489 = vtanh.pop %v2439
  %v2490 = vtanh.pop %v2444
  %v2491 = vtanh.pop %v2449
  %v2492 = vtanh.pop %v2454
  %v2493 = vtanh.pop %v2459
  %v2494 = vmul.f32 %v2462, 5.0
  %v2495 = vmul.f32 %v2463, 5.0
  %v2496 = vmul.f32 %v2464, 5.0
  %v2497 = vmul.f32 %v2465, 5.0
  %v2498 = vmul.f32 %v2466, 5.0
  %v2499 = vmul.f32 %v2467, 5.0
  %v2500 = vmul.f32 %v2468, 5.0
  %v2501 = vmul.f32 %v2469, 5.0
  %v2502 = vmul.f32 %v2470, 5.0
  %v2503 = vmul.f32 %v2471, 5.0
  %v2504 = vmul.f32 %v2472, 5.0
  %v2505 = vmul.f32 %v2473, 5.0
  %v2506 = vmul.f32 %v2474, 5.0
  %v2507 = vmul.f32 %v2475, 5.0
  %v2508 = vmul.f32 %v2476, 5.0
  %v2509 = vmul.f32 %v2477, 5.0
  %v2510 = vmul.f32 %v2478, 5.0
  %v2511 = vmul.f32 %v2479, 5.0
  %v2512 = vmul.f32 %v2480, 5.0
  %v2513 = vmul.f32 %v2481, 5.0
  %v2514 = vmul.f32 %v2482, 5.0
  %v2515 = vmul.f32 %v2483, 5.0
  %v2516 = vmul.f32 %v2484, 5.0
  %v2517 = vmul.f32 %v2485, 5.0
  %v2518 = vmul.f32 %v2486, 5.0
  %v2519 = vmul.f32 %v2487, 5.0
  %v2520 = vmul.f32 %v2488, 5.0
  %v2521 = vmul.f32 %v2489, 5.0
  %v2522 = vmul.f32 %v2490, 5.0
  %v2523 = vmul.f32 %v2491, 5.0
  %v2524 = vmul.f32 %v2492, 5.0
  %v2525 = vmul.f32 %v2493, 5.0
  %vm2526 = vcmp.gt.f32.partialorder %v2304, 20.0
  %vm2527 = vcmp.gt.f32.partialorder %v2309, 20.0
  %vm2528 = vcmp.gt.f32.partialorder %v2314, 20.0
  %vm2529 = vcmp.gt.f32.partialorder %v2319, 20.0
  %vm2530 = vcmp.gt.f32.partialorder %v2324, 20.0
  %vm2531 = vcmp.gt.f32.partialorder %v2329, 20.0
  %vm2532 = vcmp.gt.f32.partialorder %v2334, 20.0
  %vm2533 = vcmp.gt.f32.partialorder %v2339, 20.0
  %vm2534 = vcmp.gt.f32.partialorder %v2344, 20.0
  %vm2535 = vcmp.gt.f32.partialorder %v2349, 20.0
  %vm2536 = vcmp.gt.f32.partialorder %v2354, 20.0
  %vm2537 = vcmp.gt.f32.partialorder %v2359, 20.0
  %vm2538 = vcmp.gt.f32.partialorder %v2364, 20.0
  %vm2539 = vcmp.gt.f32.partialorder %v2369, 20.0
  %vm2540 = vcmp.gt.f32.partialorder %v2374, 20.0
  %vm2541 = vcmp.gt.f32.partialorder %v2379, 20.0
  %vm2542 = vcmp.gt.f32.partialorder %v2384, 20.0
  %vm2543 = vcmp.gt.f32.partialorder %v2389, 20.0
  %vm2544 = vcmp.gt.f32.partialorder %v2394, 20.0
  %vm2545 = vcmp.gt.f32.partialorder %v2399, 20.0
  %vm2546 = vcmp.gt.f32.partialorder %v2404, 20.0
  %vm2547 = vcmp.gt.f32.partialorder %v2409, 20.0
  %vm2548 = vcmp.gt.f32.partialorder %v2414, 20.0
  %vm2549 = vcmp.gt.f32.partialorder %v2419, 20.0
  %vm2550 = vcmp.gt.f32.partialorder %v2424, 20.0
  %vm2551 = vcmp.gt.f32.partialorder %v2429, 20.0
  %vm2552 = vcmp.gt.f32.partialorder %v2434, 20.0
  %vm2553 = vcmp.gt.f32.partialorder %v2439, 20.0
  %vm2554 = vcmp.gt.f32.partialorder %v2444, 20.0
  %vm2555 = vcmp.gt.f32.partialorder %v2449, 20.0
  %vm2556 = vcmp.gt.f32.partialorder %v2454, 20.0
  %vm2557 = vcmp.gt.f32.partialorder %v2459, 20.0
  %v2558 = vmin.f32 %v2304, 20.0
  %v2559 = vmin.f32 %v2309, 20.0
  %v2560 = vmin.f32 %v2314, 20.0
  %v2561 = vmin.f32 %v2319, 20.0
  %v2562 = vmin.f32 %v2324, 20.0
  %v2563 = vmin.f32 %v2329, 20.0
  %v2564 = vmin.f32 %v2334, 20.0
  %v2565 = vmin.f32 %v2339, 20.0
  %v2566 = vmin.f32 %v2344, 20.0
  %v2567 = vmin.f32 %v2349, 20.0
  %v2568 = vmin.f32 %v2354, 20.0
  %v2569 = vmin.f32 %v2359, 20.0
  %v2570 = vmin.f32 %v2364, 20.0
  %v2571 = vmin.f32 %v2369, 20.0
  %v2572 = vmin.f32 %v2374, 20.0
  %v2573 = vmin.f32 %v2379, 20.0
  %v2574 = vmin.f32 %v2384, 20.0
  %v2575 = vmin.f32 %v2389, 20.0
  %v2576 = vmin.f32 %v2394, 20.0
  %v2577 = vmin.f32 %v2399, 20.0
  %v2578 = vmin.f32 %v2404, 20.0
  %v2579 = vmin.f32 %v2409, 20.0
  %v2580 = vmin.f32 %v2414, 20.0
  %v2581 = vmin.f32 %v2419, 20.0
  %v2582 = vmin.f32 %v2424, 20.0
  %v2583 = vmin.f32 %v2429, 20.0
  %v2584 = vmin.f32 %v2434, 20.0
  %v2585 = vmin.f32 %v2439, 20.0
  %v2586 = vmin.f32 %v2444, 20.0
  %v2587 = vmin.f32 %v2449, 20.0
  %v2588 = vmin.f32 %v2454, 20.0
  %v2589 = vmin.f32 %v2459, 20.0
  %v2590 = vmul.f32 %v2558, 1.442695
  %v2591 = vpow.pop %v2590
  %v2592 = vmul.f32 %v2559, 1.442695
  %v2593 = vpow.pop %v2592
  %v2594 = vmul.f32 %v2560, 1.442695
  %v2595 = vpow.pop %v2594
  %v2596 = vmul.f32 %v2561, 1.442695
  %v2597 = vpow.pop %v2596
  %v2598 = vmul.f32 %v2562, 1.442695
  %v2599 = vpow.pop %v2598
  %v2600 = vmul.f32 %v2563, 1.442695
  %v2601 = vpow.pop %v2600
  %v2602 = vmul.f32 %v2564, 1.442695
  %v2603 = vpow.pop %v2602
  %v2604 = vmul.f32 %v2565, 1.442695
  %v2605 = vpow.pop %v2604
  %v2606 = vmul.f32 %v2566, 1.442695
  %v2607 = vpow.pop %v2606
  %v2608 = vmul.f32 %v2567, 1.442695
  %v2609 = vpow.pop %v2608
  %v2610 = vmul.f32 %v2568, 1.442695
  %v2611 = vpow.pop %v2610
  %v2612 = vmul.f32 %v2569, 1.442695
  %v2613 = vpow.pop %v2612
  %v2614 = vmul.f32 %v2570, 1.442695
  %v2615 = vpow.pop %v2614
  %v2616 = vmul.f32 %v2571, 1.442695
  %v2617 = vpow.pop %v2616
  %v2618 = vmul.f32 %v2572, 1.442695
  %v2619 = vpow.pop %v2618
  %v2620 = vmul.f32 %v2573, 1.442695
  %v2621 = vpow.pop %v2620
  %v2622 = vmul.f32 %v2574, 1.442695
  %v2623 = vpow.pop %v2622
  %v2624 = vmul.f32 %v2575, 1.442695
  %v2625 = vpow.pop %v2624
  %v2626 = vmul.f32 %v2576, 1.442695
  %v2627 = vpow.pop %v2626
  %v2628 = vmul.f32 %v2577, 1.442695
  %v2629 = vpow.pop %v2628
  %v2630 = vmul.f32 %v2578, 1.442695
  %v2631 = vpow.pop %v2630
  %v2632 = vmul.f32 %v2579, 1.442695
  %v2633 = vpow.pop %v2632
  %v2634 = vmul.f32 %v2580, 1.442695
  %v2635 = vpow.pop %v2634
  %v2636 = vmul.f32 %v2581, 1.442695
  %v2637 = vpow.pop %v2636
  %v2638 = vmul.f32 %v2582, 1.442695
  %v2639 = vpow.pop %v2638
  %v2640 = vmul.f32 %v2583, 1.442695
  %v2641 = vpow.pop %v2640
  %v2642 = vmul.f32 %v2584, 1.442695
  %v2643 = vpow.pop %v2642
  %v2644 = vmul.f32 %v2585, 1.442695
  %v2645 = vpow.pop %v2644
  %v2646 = vmul.f32 %v2586, 1.442695
  %v2647 = vpow.pop %v2646
  %v2648 = vmul.f32 %v2587, 1.442695
  %v2649 = vpow.pop %v2648
  %v2650 = vmul.f32 %v2588, 1.442695
  %v2651 = vpow.pop %v2650
  %v2652 = vmul.f32 %v2589, 1.442695
  %v2653 = vpow.pop %v2652
  %v2654 = vadd.f32 %v2591, 1.0
  %v2655 = vadd.f32 %v2593, 1.0
  %v2656 = vadd.f32 %v2595, 1.0
  %v2657 = vadd.f32 %v2597, 1.0
  %v2658 = vadd.f32 %v2599, 1.0
  %v2659 = vadd.f32 %v2601, 1.0
  %v2660 = vadd.f32 %v2603, 1.0
  %v2661 = vadd.f32 %v2605, 1.0
  %v2662 = vadd.f32 %v2607, 1.0
  %v2663 = vadd.f32 %v2609, 1.0
  %v2664 = vadd.f32 %v2611, 1.0
  %v2665 = vadd.f32 %v2613, 1.0
  %v2666 = vadd.f32 %v2615, 1.0
  %v2667 = vadd.f32 %v2617, 1.0
  %v2668 = vadd.f32 %v2619, 1.0
  %v2669 = vadd.f32 %v2621, 1.0
  %v2670 = vadd.f32 %v2623, 1.0
  %v2671 = vadd.f32 %v2625, 1.0
  %v2672 = vadd.f32 %v2627, 1.0
  %v2673 = vadd.f32 %v2629, 1.0
  %v2674 = vadd.f32 %v2631, 1.0
  %v2675 = vadd.f32 %v2633, 1.0
  %v2676 = vadd.f32 %v2635, 1.0
  %v2677 = vadd.f32 %v2637, 1.0
  %v2678 = vadd.f32 %v2639, 1.0
  %v2679 = vadd.f32 %v2641, 1.0
  %v2680 = vadd.f32 %v2643, 1.0
  %v2681 = vadd.f32 %v2645, 1.0
  %v2682 = vadd.f32 %v2647, 1.0
  %v2683 = vadd.f32 %v2649, 1.0
  %v2684 = vadd.f32 %v2651, 1.0
  %v2685 = vadd.f32 %v2653, 1.0
  %v2686 = vlog2.pop %v2654
  %v2687 = vmul.f32 %v2686, 0.6931472
  %v2688 = vlog2.pop %v2655
  %v2689 = vmul.f32 %v2688, 0.6931472
  %v2690 = vlog2.pop %v2656
  %v2691 = vmul.f32 %v2690, 0.6931472
  %v2692 = vlog2.pop %v2657
  %v2693 = vmul.f32 %v2692, 0.6931472
  %v2694 = vlog2.pop %v2658
  %v2695 = vmul.f32 %v2694, 0.6931472
  %v2696 = vlog2.pop %v2659
  %v2697 = vmul.f32 %v2696, 0.6931472
  %v2698 = vlog2.pop %v2660
  %v2699 = vmul.f32 %v2698, 0.6931472
  %v2700 = vlog2.pop %v2661
  %v2701 = vmul.f32 %v2700, 0.6931472
  %v2702 = vlog2.pop %v2662
  %v2703 = vmul.f32 %v2702, 0.6931472
  %v2704 = vlog2.pop %v2663
  %v2705 = vmul.f32 %v2704, 0.6931472
  %v2706 = vlog2.pop %v2664
  %v2707 = vmul.f32 %v2706, 0.6931472
  %v2708 = vlog2.pop %v2665
  %v2709 = vmul.f32 %v2708, 0.6931472
  %v2710 = vlog2.pop %v2666
  %v2711 = vmul.f32 %v2710, 0.6931472
  %v2712 = vlog2.pop %v2667
  %v2713 = vmul.f32 %v2712, 0.6931472
  %v2714 = vlog2.pop %v2668
  %v2715 = vmul.f32 %v2714, 0.6931472
  %v2716 = vlog2.pop %v2669
  %v2717 = vmul.f32 %v2716, 0.6931472
  %v2718 = vlog2.pop %v2670
  %v2719 = vmul.f32 %v2718, 0.6931472
  %v2720 = vlog2.pop %v2671
  %v2721 = vmul.f32 %v2720, 0.6931472
  %v2722 = vlog2.pop %v2672
  %v2723 = vmul.f32 %v2722, 0.6931472
  %v2724 = vlog2.pop %v2673
  %v2725 = vmul.f32 %v2724, 0.6931472
  %v2726 = vlog2.pop %v2674
  %v2727 = vmul.f32 %v2726, 0.6931472
  %v2728 = vlog2.pop %v2675
  %v2729 = vmul.f32 %v2728, 0.6931472
  %v2730 = vlog2.pop %v2676
  %v2731 = vmul.f32 %v2730, 0.6931472
  %v2732 = vlog2.pop %v2677
  %v2733 = vmul.f32 %v2732, 0.6931472
  %v2734 = vlog2.pop %v2678
  %v2735 = vmul.f32 %v2734, 0.6931472
  %v2736 = vlog2.pop %v2679
  %v2737 = vmul.f32 %v2736, 0.6931472
  %v2738 = vlog2.pop %v2680
  %v2739 = vmul.f32 %v2738, 0.6931472
  %v2740 = vlog2.pop %v2681
  %v2741 = vmul.f32 %v2740, 0.6931472
  %v2742 = vlog2.pop %v2682
  %v2743 = vmul.f32 %v2742, 0.6931472
  %v2744 = vlog2.pop %v2683
  %v2745 = vmul.f32 %v2744, 0.6931472
  %v2746 = vlog2.pop %v2684
  %v2747 = vmul.f32 %v2746, 0.6931472
  %v2748 = vlog2.pop %v2685
  %v2749 = vmul.f32 %v2748, 0.6931472
  %v2750 = vsel %vm2526, %v2304, %v2687
  %v2751 = vsel %vm2527, %v2309, %v2689
  %v2752 = vsel %vm2528, %v2314, %v2691
  %v2753 = vsel %vm2529, %v2319, %v2693
  %v2754 = vsel %vm2530, %v2324, %v2695
  %v2755 = vsel %vm2531, %v2329, %v2697
  %v2756 = vsel %vm2532, %v2334, %v2699
  %v2757 = vsel %vm2533, %v2339, %v2701
  %v2758 = vsel %vm2534, %v2344, %v2703
  %v2759 = vsel %vm2535, %v2349, %v2705
  %v2760 = vsel %vm2536, %v2354, %v2707
  %v2761 = vsel %vm2537, %v2359, %v2709
  %v2762 = vsel %vm2538, %v2364, %v2711
  %v2763 = vsel %vm2539, %v2369, %v2713
  %v2764 = vsel %vm2540, %v2374, %v2715
  %v2765 = vsel %vm2541, %v2379, %v2717
  %v2766 = vsel %vm2542, %v2384, %v2719
  %v2767 = vsel %vm2543, %v2389, %v2721
  %v2768 = vsel %vm2544, %v2394, %v2723
  %v2769 = vsel %vm2545, %v2399, %v2725
  %v2770 = vsel %vm2546, %v2404, %v2727
  %v2771 = vsel %vm2547, %v2409, %v2729
  %v2772 = vsel %vm2548, %v2414, %v2731
  %v2773 = vsel %vm2549, %v2419, %v2733
  %v2774 = vsel %vm2550, %v2424, %v2735
  %v2775 = vsel %vm2551, %v2429, %v2737
  %v2776 = vsel %vm2552, %v2434, %v2739
  %v2777 = vsel %vm2553, %v2439, %v2741
  %v2778 = vsel %vm2554, %v2444, %v2743
  %v2779 = vsel %vm2555, %v2449, %v2745
  %v2780 = vsel %vm2556, %v2454, %v2747
  %v2781 = vsel %vm2557, %v2459, %v2749
  %v2782 = vadd.f32 %v2750, 0.0001
  %v2783 = vadd.f32 %v2751, 0.0001
  %v2784 = vadd.f32 %v2752, 0.0001
  %v2785 = vadd.f32 %v2753, 0.0001
  %v2786 = vadd.f32 %v2754, 0.0001
  %v2787 = vadd.f32 %v2755, 0.0001
  %v2788 = vadd.f32 %v2756, 0.0001
  %v2789 = vadd.f32 %v2757, 0.0001
  %v2790 = vadd.f32 %v2758, 0.0001
  %v2791 = vadd.f32 %v2759, 0.0001
  %v2792 = vadd.f32 %v2760, 0.0001
  %v2793 = vadd.f32 %v2761, 0.0001
  %v2794 = vadd.f32 %v2762, 0.0001
  %v2795 = vadd.f32 %v2763, 0.0001
  %v2796 = vadd.f32 %v2764, 0.0001
  %v2797 = vadd.f32 %v2765, 0.0001
  %v2798 = vadd.f32 %v2766, 0.0001
  %v2799 = vadd.f32 %v2767, 0.0001
  %v2800 = vadd.f32 %v2768, 0.0001
  %v2801 = vadd.f32 %v2769, 0.0001
  %v2802 = vadd.f32 %v2770, 0.0001
  %v2803 = vadd.f32 %v2771, 0.0001
  %v2804 = vadd.f32 %v2772, 0.0001
  %v2805 = vadd.f32 %v2773, 0.0001
  %v2806 = vadd.f32 %v2774, 0.0001
  %v2807 = vadd.f32 %v2775, 0.0001
  %v2808 = vadd.f32 %v2776, 0.0001
  %v2809 = vadd.f32 %v2777, 0.0001
  %v2810 = vadd.f32 %v2778, 0.0001
  %v2811 = vadd.f32 %v2779, 0.0001
  %v2812 = vadd.f32 %v2780, 0.0001
  %v2813 = vadd.f32 %v2781, 0.0001
  %2814 = vrot.lane.b32.xlu0 %v11, 98
  %v2815 = vpop.permute.xlu0 %2814
  %2816 = vrot.lane.b32.xlu0 %v12, 98
  %v2817 = vpop.permute.xlu0 %2816
  %2818 = vrot.lane.b32.xlu0 %v13, 98
  %v2819 = vpop.permute.xlu0 %2818
  %2820 = vrot.lane.b32.xlu0 %v14, 98
  %v2821 = vpop.permute.xlu0 %2820
  %2822 = vrot.lane.b32.xlu0 %v15, 98
  %v2823 = vpop.permute.xlu0 %2822
  %2824 = vrot.lane.b32.xlu0 %v16, 98
  %v2825 = vpop.permute.xlu0 %2824
  %2826 = vrot.lane.b32.xlu0 %v17, 98
  %v2827 = vpop.permute.xlu0 %2826
  %2828 = vrot.lane.b32.xlu0 %v18, 98
  %v2829 = vpop.permute.xlu0 %2828
  %2830 = vrot.lane.b32.xlu0 %v19, 98
  %v2831 = vpop.permute.xlu0 %2830
  %2832 = vrot.lane.b32.xlu0 %v20, 98
  %v2833 = vpop.permute.xlu0 %2832
  %2834 = vrot.lane.b32.xlu0 %v21, 98
  %v2835 = vpop.permute.xlu0 %2834
  %2836 = vrot.lane.b32.xlu0 %v22, 98
  %v2837 = vpop.permute.xlu0 %2836
  %2838 = vrot.lane.b32.xlu0 %v23, 98
  %v2839 = vpop.permute.xlu0 %2838
  %2840 = vrot.lane.b32.xlu0 %v24, 98
  %v2841 = vpop.permute.xlu0 %2840
  %2842 = vrot.lane.b32.xlu0 %v25, 98
  %v2843 = vpop.permute.xlu0 %2842
  %2844 = vrot.lane.b32.xlu0 %v26, 98
  %v2845 = vpop.permute.xlu0 %2844
  %2846 = vrot.lane.b32.xlu0 %v27, 98
  %v2847 = vpop.permute.xlu0 %2846
  %2848 = vrot.lane.b32.xlu0 %v28, 98
  %v2849 = vpop.permute.xlu0 %2848
  %2850 = vrot.lane.b32.xlu0 %v29, 98
  %v2851 = vpop.permute.xlu0 %2850
  %2852 = vrot.lane.b32.xlu0 %v30, 98
  %v2853 = vpop.permute.xlu0 %2852
  %2854 = vrot.lane.b32.xlu0 %v31, 98
  %v2855 = vpop.permute.xlu0 %2854
  %2856 = vrot.lane.b32.xlu0 %v32, 98
  %v2857 = vpop.permute.xlu0 %2856
  %2858 = vrot.lane.b32.xlu0 %v33, 98
  %v2859 = vpop.permute.xlu0 %2858
  %2860 = vrot.lane.b32.xlu0 %v34, 98
  %v2861 = vpop.permute.xlu0 %2860
  %2862 = vrot.lane.b32.xlu0 %v35, 98
  %v2863 = vpop.permute.xlu0 %2862
  %2864 = vrot.lane.b32.xlu0 %v36, 98
  %v2865 = vpop.permute.xlu0 %2864
  %2866 = vrot.lane.b32.xlu0 %v37, 98
  %v2867 = vpop.permute.xlu0 %2866
  %2868 = vrot.lane.b32.xlu0 %v38, 98
  %v2869 = vpop.permute.xlu0 %2868
  %2870 = vrot.lane.b32.xlu0 %v39, 98
  %v2871 = vpop.permute.xlu0 %2870
  %2872 = vrot.lane.b32.xlu0 %v40, 98
  %v2873 = vpop.permute.xlu0 %2872
  %2874 = vrot.lane.b32.xlu0 %v41, 98
  %v2875 = vpop.permute.xlu0 %2874
  %2876 = vrot.lane.b32.xlu0 %v42, 98
  %v2877 = vpop.permute.xlu0 %2876
  %v2910 = vmul.f32 %v2782, %v2815
  %v2911 = vmul.f32 %v2783, %v2817
  %v2912 = vmul.f32 %v2784, %v2819
  %v2913 = vmul.f32 %v2785, %v2821
  %v2914 = vmul.f32 %v2786, %v2823
  %v2915 = vmul.f32 %v2787, %v2825
  %v2916 = vmul.f32 %v2788, %v2827
  %v2917 = vmul.f32 %v2789, %v2829
  %v2918 = vmul.f32 %v2790, %v2831
  %v2919 = vmul.f32 %v2791, %v2833
  %v2920 = vmul.f32 %v2792, %v2835
  %v2921 = vmul.f32 %v2793, %v2837
  %v2922 = vmul.f32 %v2794, %v2839
  %v2923 = vmul.f32 %v2795, %v2841
  %v2924 = vmul.f32 %v2796, %v2843
  %v2925 = vmul.f32 %v2797, %v2845
  %v2926 = vmul.f32 %v2798, %v2847
  %v2927 = vmul.f32 %v2799, %v2849
  %v2928 = vmul.f32 %v2800, %v2851
  %v2929 = vmul.f32 %v2801, %v2853
  %v2930 = vmul.f32 %v2802, %v2855
  %v2931 = vmul.f32 %v2803, %v2857
  %v2932 = vmul.f32 %v2804, %v2859
  %v2933 = vmul.f32 %v2805, %v2861
  %v2934 = vmul.f32 %v2806, %v2863
  %v2935 = vmul.f32 %v2807, %v2865
  %v2936 = vmul.f32 %v2808, %v2867
  %v2937 = vmul.f32 %v2809, %v2869
  %v2938 = vmul.f32 %v2810, %v2871
  %v2939 = vmul.f32 %v2811, %v2873
  %v2940 = vmul.f32 %v2812, %v2875
  %v2941 = vmul.f32 %v2813, %v2877
  %2974 = vrot.lane.b32.xlu0 %v2910, 126
  %v2975 = vpop.permute.xlu0 %2974
  %2976 = vrot.lane.b32.xlu0 %v2911, 126
  %v2977 = vpop.permute.xlu0 %2976
  %2978 = vrot.lane.b32.xlu0 %v2912, 126
  %v2979 = vpop.permute.xlu0 %2978
  %2980 = vrot.lane.b32.xlu0 %v2913, 126
  %v2981 = vpop.permute.xlu0 %2980
  %2982 = vrot.lane.b32.xlu0 %v2914, 126
  %v2983 = vpop.permute.xlu0 %2982
  %2984 = vrot.lane.b32.xlu0 %v2915, 126
  %v2985 = vpop.permute.xlu0 %2984
  %2986 = vrot.lane.b32.xlu0 %v2916, 126
  %v2987 = vpop.permute.xlu0 %2986
  %2988 = vrot.lane.b32.xlu0 %v2917, 126
  %v2989 = vpop.permute.xlu0 %2988
  %2990 = vrot.lane.b32.xlu0 %v2918, 126
  %v2991 = vpop.permute.xlu0 %2990
  %2992 = vrot.lane.b32.xlu0 %v2919, 126
  %v2993 = vpop.permute.xlu0 %2992
  %2994 = vrot.lane.b32.xlu0 %v2920, 126
  %v2995 = vpop.permute.xlu0 %2994
  %2996 = vrot.lane.b32.xlu0 %v2921, 126
  %v2997 = vpop.permute.xlu0 %2996
  %2998 = vrot.lane.b32.xlu0 %v2922, 126
  %v2999 = vpop.permute.xlu0 %2998
  %3000 = vrot.lane.b32.xlu0 %v2923, 126
  %v3001 = vpop.permute.xlu0 %3000
  %3002 = vrot.lane.b32.xlu0 %v2924, 126
  %v3003 = vpop.permute.xlu0 %3002
  %3004 = vrot.lane.b32.xlu0 %v2925, 126
  %v3005 = vpop.permute.xlu0 %3004
  %3006 = vrot.lane.b32.xlu0 %v2926, 126
  %v3007 = vpop.permute.xlu0 %3006
  %3008 = vrot.lane.b32.xlu0 %v2927, 126
  %v3009 = vpop.permute.xlu0 %3008
  %3010 = vrot.lane.b32.xlu0 %v2928, 126
  %v3011 = vpop.permute.xlu0 %3010
  %3012 = vrot.lane.b32.xlu0 %v2929, 126
  %v3013 = vpop.permute.xlu0 %3012
  %3014 = vrot.lane.b32.xlu0 %v2930, 126
  %v3015 = vpop.permute.xlu0 %3014
  %3016 = vrot.lane.b32.xlu0 %v2931, 126
  %v3017 = vpop.permute.xlu0 %3016
  %3018 = vrot.lane.b32.xlu0 %v2932, 126
  %v3019 = vpop.permute.xlu0 %3018
  %3020 = vrot.lane.b32.xlu0 %v2933, 126
  %v3021 = vpop.permute.xlu0 %3020
  %3022 = vrot.lane.b32.xlu0 %v2934, 126
  %v3023 = vpop.permute.xlu0 %3022
  %3024 = vrot.lane.b32.xlu0 %v2935, 126
  %v3025 = vpop.permute.xlu0 %3024
  %3026 = vrot.lane.b32.xlu0 %v2936, 126
  %v3027 = vpop.permute.xlu0 %3026
  %3028 = vrot.lane.b32.xlu0 %v2937, 126
  %v3029 = vpop.permute.xlu0 %3028
  %3030 = vrot.lane.b32.xlu0 %v2938, 126
  %v3031 = vpop.permute.xlu0 %3030
  %3032 = vrot.lane.b32.xlu0 %v2939, 126
  %v3033 = vpop.permute.xlu0 %3032
  %3034 = vrot.lane.b32.xlu0 %v2940, 126
  %v3035 = vpop.permute.xlu0 %3034
  %3036 = vrot.lane.b32.xlu0 %v2941, 126
  %v3037 = vpop.permute.xlu0 %3036
  %v3070 = vadd.f32 %v2494, %v2975
  %v3071 = vadd.f32 %v2495, %v2977
  %v3072 = vadd.f32 %v2496, %v2979
  %v3073 = vadd.f32 %v2497, %v2981
  %v3074 = vadd.f32 %v2498, %v2983
  %v3075 = vadd.f32 %v2499, %v2985
  %v3076 = vadd.f32 %v2500, %v2987
  %v3077 = vadd.f32 %v2501, %v2989
  %v3078 = vadd.f32 %v2502, %v2991
  %v3079 = vadd.f32 %v2503, %v2993
  %v3080 = vadd.f32 %v2504, %v2995
  %v3081 = vadd.f32 %v2505, %v2997
  %v3082 = vadd.f32 %v2506, %v2999
  %v3083 = vadd.f32 %v2507, %v3001
  %v3084 = vadd.f32 %v2508, %v3003
  %v3085 = vadd.f32 %v2509, %v3005
  %v3086 = vadd.f32 %v2510, %v3007
  %v3087 = vadd.f32 %v2511, %v3009
  %v3088 = vadd.f32 %v2512, %v3011
  %v3089 = vadd.f32 %v2513, %v3013
  %v3090 = vadd.f32 %v2514, %v3015
  %v3091 = vadd.f32 %v2515, %v3017
  %v3092 = vadd.f32 %v2516, %v3019
  %v3093 = vadd.f32 %v2517, %v3021
  %v3094 = vadd.f32 %v2518, %v3023
  %v3095 = vadd.f32 %v2519, %v3025
  %v3096 = vadd.f32 %v2520, %v3027
  %v3097 = vadd.f32 %v2521, %v3029
  %v3098 = vadd.f32 %v2522, %v3031
  %v3099 = vadd.f32 %v2523, %v3033
  %v3100 = vadd.f32 %v2524, %v3035
  %v3101 = vadd.f32 %v2525, %v3037
  %v3102 = vtanh.pop %v3070
  %v3103 = vtanh.pop %v3071
  %v3104 = vtanh.pop %v3072
  %v3105 = vtanh.pop %v3073
  %v3106 = vtanh.pop %v3074
  %v3107 = vtanh.pop %v3075
  %v3108 = vtanh.pop %v3076
  %v3109 = vtanh.pop %v3077
  %v3110 = vtanh.pop %v3078
  %v3111 = vtanh.pop %v3079
  %v3112 = vtanh.pop %v3080
  %v3113 = vtanh.pop %v3081
  %v3114 = vtanh.pop %v3082
  %v3115 = vtanh.pop %v3083
  %v3116 = vtanh.pop %v3084
  %v3117 = vtanh.pop %v3085
  %v3118 = vtanh.pop %v3086
  %v3119 = vtanh.pop %v3087
  %v3120 = vtanh.pop %v3088
  %v3121 = vtanh.pop %v3089
  %v3122 = vtanh.pop %v3090
  %v3123 = vtanh.pop %v3091
  %v3124 = vtanh.pop %v3092
  %v3125 = vtanh.pop %v3093
  %v3126 = vtanh.pop %v3094
  %v3127 = vtanh.pop %v3095
  %v3128 = vtanh.pop %v3096
  %v3129 = vtanh.pop %v3097
  %v3130 = vtanh.pop %v3098
  %v3131 = vtanh.pop %v3099
  %v3132 = vtanh.pop %v3100
  %v3133 = vtanh.pop %v3101
  %v3134 = vld [vmem:[%s1 + $0xa5] sm:$0x1]
  %v3135 = vlaneseq
  %v3136 = vshrl.u32 %v3135, 7
  %v3137 = vsub.s32 0, %v3136
  %v3138 = vrot.slane %v3134, %v3137
  %v3139 = vmul.f32 %v3102, %v3138
  %v3140 = vmul.f32 %v3103, %v3138
  %v3141 = vmul.f32 %v3104, %v3138
  %v3142 = vmul.f32 %v3105, %v3138
  %v3143 = vmul.f32 %v3106, %v3138
  %v3144 = vmul.f32 %v3107, %v3138
  %v3145 = vmul.f32 %v3108, %v3138
  %v3146 = vmul.f32 %v3109, %v3138
  %v3147 = vmul.f32 %v3110, %v3138
  %v3148 = vmul.f32 %v3111, %v3138
  %v3149 = vmul.f32 %v3112, %v3138
  %v3150 = vmul.f32 %v3113, %v3138
  %v3151 = vmul.f32 %v3114, %v3138
  %v3152 = vmul.f32 %v3115, %v3138
  %v3153 = vmul.f32 %v3116, %v3138
  %v3154 = vmul.f32 %v3117, %v3138
  %v3155 = vmul.f32 %v3118, %v3138
  %v3156 = vmul.f32 %v3119, %v3138
  %v3157 = vmul.f32 %v3120, %v3138
  %v3158 = vmul.f32 %v3121, %v3138
  %v3159 = vmul.f32 %v3122, %v3138
  %v3160 = vmul.f32 %v3123, %v3138
  %v3161 = vmul.f32 %v3124, %v3138
  %v3162 = vmul.f32 %v3125, %v3138
  %v3163 = vmul.f32 %v3126, %v3138
  %v3164 = vmul.f32 %v3127, %v3138
  %v3165 = vmul.f32 %v3128, %v3138
  %v3166 = vmul.f32 %v3129, %v3138
  %v3167 = vmul.f32 %v3130, %v3138
  %v3168 = vmul.f32 %v3131, %v3138
  %v3169 = vmul.f32 %v3132, %v3138
  %v3170 = vmul.f32 %v3133, %v3138
  %v3171 = vld [vmem:[%s1 + $0xa6] sm:$0x1]
  %v3172 = vlaneseq
  %v3173 = vshrl.u32 %v3172, 7
  %v3174 = vsub.s32 0, %v3173
  %v3175 = vrot.slane %v3171, %v3174
  %v3176 = vadd.f32 %v3139, %v3175
  %v3177 = vadd.f32 %v3140, %v3175
  %v3178 = vadd.f32 %v3141, %v3175
  %v3179 = vadd.f32 %v3142, %v3175
  %v3180 = vadd.f32 %v3143, %v3175
  %v3181 = vadd.f32 %v3144, %v3175
  %v3182 = vadd.f32 %v3145, %v3175
  %v3183 = vadd.f32 %v3146, %v3175
  %v3184 = vadd.f32 %v3147, %v3175
  %v3185 = vadd.f32 %v3148, %v3175
  %v3186 = vadd.f32 %v3149, %v3175
  %v3187 = vadd.f32 %v3150, %v3175
  %v3188 = vadd.f32 %v3151, %v3175
  %v3189 = vadd.f32 %v3152, %v3175
  %v3190 = vadd.f32 %v3153, %v3175
  %v3191 = vadd.f32 %v3154, %v3175
  %v3192 = vadd.f32 %v3155, %v3175
  %v3193 = vadd.f32 %v3156, %v3175
  %v3194 = vadd.f32 %v3157, %v3175
  %v3195 = vadd.f32 %v3158, %v3175
  %v3196 = vadd.f32 %v3159, %v3175
  %v3197 = vadd.f32 %v3160, %v3175
  %v3198 = vadd.f32 %v3161, %v3175
  %v3199 = vadd.f32 %v3162, %v3175
  %v3200 = vadd.f32 %v3163, %v3175
  %v3201 = vadd.f32 %v3164, %v3175
  %v3202 = vadd.f32 %v3165, %v3175
  %v3203 = vadd.f32 %v3166, %v3175
  %v3204 = vadd.f32 %v3167, %v3175
  %v3205 = vadd.f32 %v3168, %v3175
  %v3206 = vadd.f32 %v3169, %v3175
  %v3207 = vadd.f32 %v3170, %v3175
  %vm3208 = vcmask 15360
  %3209 = vst.msk [vmem:[%s2] sm:$0xff] %vm3208, %v3176
  %3210 = vst.msk [vmem:[%s2 + $0x8] sm:$0xff] %vm3208, %v3177
  %3211 = vst.msk [vmem:[%s2 + $0x10] sm:$0xff] %vm3208, %v3178
  %3212 = vst.msk [vmem:[%s2 + $0x18] sm:$0xff] %vm3208, %v3179
  %3213 = vst.msk [vmem:[%s2 + $0x20] sm:$0xff] %vm3208, %v3180
  %3214 = vst.msk [vmem:[%s2 + $0x28] sm:$0xff] %vm3208, %v3181
  %3215 = vst.msk [vmem:[%s2 + $0x30] sm:$0xff] %vm3208, %v3182
  %3216 = vst.msk [vmem:[%s2 + $0x38] sm:$0xff] %vm3208, %v3183
  %3217 = vst.msk [vmem:[%s2 + $0x40] sm:$0xff] %vm3208, %v3184
  %3218 = vst.msk [vmem:[%s2 + $0x48] sm:$0xff] %vm3208, %v3185
  %3219 = vst.msk [vmem:[%s2 + $0x50] sm:$0xff] %vm3208, %v3186
  %3220 = vst.msk [vmem:[%s2 + $0x58] sm:$0xff] %vm3208, %v3187
  %3221 = vst.msk [vmem:[%s2 + $0x60] sm:$0xff] %vm3208, %v3188
  %3222 = vst.msk [vmem:[%s2 + $0x68] sm:$0xff] %vm3208, %v3189
  %3223 = vst.msk [vmem:[%s2 + $0x70] sm:$0xff] %vm3208, %v3190
  %3224 = vst.msk [vmem:[%s2 + $0x78] sm:$0xff] %vm3208, %v3191
  %3225 = vst.msk [vmem:[%s2 + $0x80] sm:$0xff] %vm3208, %v3192
  %3226 = vst.msk [vmem:[%s2 + $0x88] sm:$0xff] %vm3208, %v3193
  %3227 = vst.msk [vmem:[%s2 + $0x90] sm:$0xff] %vm3208, %v3194
  %3228 = vst.msk [vmem:[%s2 + $0x98] sm:$0xff] %vm3208, %v3195
  %3229 = vst.msk [vmem:[%s2 + $0xa0] sm:$0xff] %vm3208, %v3196
  %3230 = vst.msk [vmem:[%s2 + $0xa8] sm:$0xff] %vm3208, %v3197
  %3231 = vst.msk [vmem:[%s2 + $0xb0] sm:$0xff] %vm3208, %v3198
  %3232 = vst.msk [vmem:[%s2 + $0xb8] sm:$0xff] %vm3208, %v3199
  %3233 = vst.msk [vmem:[%s2 + $0xc0] sm:$0xff] %vm3208, %v3200
  %3234 = vst.msk [vmem:[%s2 + $0xc8] sm:$0xff] %vm3208, %v3201
  %3235 = vst.msk [vmem:[%s2 + $0xd0] sm:$0xff] %vm3208, %v3202
  %3236 = vst.msk [vmem:[%s2 + $0xd8] sm:$0xff] %vm3208, %v3203
  %3237 = vst.msk [vmem:[%s2 + $0xe0] sm:$0xff] %vm3208, %v3204
  %3238 = vst.msk [vmem:[%s2 + $0xe8] sm:$0xff] %vm3208, %v3205
  %3239 = vst.msk [vmem:[%s2 + $0xf0] sm:$0xff] %vm3208, %v3206
  %3240 = vst.msk [vmem:[%s2 + $0xf8] sm:$0xff] %vm3208, %v3207
  // Predicated region
  $region10: #{tpu_custom_call.1} parent=0 // pred_check
    _
  $region11: #{tpu_custom_call.1} parent=0 // pred_check_branch
    %3242 = sbr.rel (0) target = $region13
  $region12: #{tpu_custom_call.1} parent=0 // pred_region
    _
  $region13: #{tpu_custom_call.1} parent=0 // pred_fallthru
    _
  // Predicated region
  $region14: #{tpu_custom_call.1} parent=0 // pred_check
    _
  $region15: #{tpu_custom_call.1} parent=0 // pred_check_branch
    %3244 = sbr.rel (0) target = $region17
  $region16: #{tpu_custom_call.1} parent=0 // pred_region
    _
  $region17: #{tpu_custom_call.1} parent=0 // pred_fallthru
    _

</llo_original>
